<compile_context>
chip_gen: v7x
topology: tpu7x:2x2x1
jax: 0.10.0
libtpu: 0.0.40
codegen_flags: <defaults>
</compile_context>

<pallas_src>
import functools

import numpy as np
import jax
import jax.numpy as jnp
from jax.experimental import pallas as pl
from jax.experimental.pallas import tpu as pltpu

CP = 16          # dw-folded conv input channels: 3*3=9 -> padded 16
KK = 3 * CP      # im2col contraction depth (3 vertical taps * CP) = 48
COUT_PAD = 128   # conv output channels padded 32 -> 128 (lane-dense)
HID_PAD = 128    # head hidden padded 64 -> 128
CLS_PAD = 128    # num_classes padded 2 -> 128


def _pick_row_tile(h):
    """Largest row tile <= 8 dividing H: keeps the per-step f32 activation tile
    small (fits v5e's 16 MiB default scoped VMEM and v7x's 64 MiB VMEM)."""
    for t in (8, 7, 6, 5, 4, 3, 2, 1):
        if h % t == 0:
            return t
    return 1


# ---------------------------------------------------------------------------
# Fused kernel: conv3x3 (K-packed) + bias + ReLU + GAP (+ cls head on last tile)
# ---------------------------------------------------------------------------
def _siamese_kernel(x_ref, wc_ref, bc_ref, w1a_ref, w1b_ref, b1_ref,
                    w2_ref, b2_ref, out_ref, feat_ref, gap_ref, col_ref,
                    *, tile, width, inv_hw):
    """Grid = (sample, row-tile).
       x_ref   : [1, 2, 1, (th+2)*W, CP] bf16  halo-duplicated row slab (2 images)
       wc_ref  : [48, COUT_PAD]          bf16  K-packed conv weights
       bc_ref  : [1, COUT_PAD]           f32   conv bias
       w1*_ref : [COUT_PAD, HID_PAD]     f32   head linear-1 (split for the concat)
       w2_ref  : [HID_PAD, CLS_PAD]      f32   head linear-2
       out_ref : [1, 1, CLS_PAD]         f32   logits (written on last row tile)
       feat_ref: [1, 1, HID_PAD]         f32   pre-fc feature (written on last tile)
       gap_ref : [2, COUT_PAD]           f32   running GAP sums (scratch)
       col_ref : [2*tile, 48]            bf16  im2col slab (scratch)
    """
    hi = pl.program_id(1)

    @pl.when(hi == 0)
    def _():
        gap_ref[...] = jnp.zeros_like(gap_ref)

    # ---- build the K-packed im2col slab (3 aligned static copies / image) ----
    # col[img*tile + q*W + j, dh*CP + (dw*3 + c)] = Xpad[img, h0+q+dh, j+dw, c]
    for img in range(2):
        for dh in range(3):
            col_ref[img * tile:(img + 1) * tile, dh * CP:(dh + 1) * CP] = (
                x_ref[0, img, 0, dh * width: dh * width + tile, :])

    # ---- single MXU dot (K=48) + bias + ReLU ---------------------------------
    acc = jnp.dot(col_ref[...], wc_ref[...], preferred_element_type=jnp.float32)
    act = jnp.maximum(acc + bc_ref[...], 0.0)          # every row is a valid pixel

    # ---- running global-average-pool sums (one per image) --------------------
    s0 = jnp.sum(act[:tile], axis=0, keepdims=True)
    s1 = jnp.sum(act[tile:], axis=0, keepdims=True)
    gap_ref[...] += jnp.concatenate([s0, s1], axis=0)

    # ---- fused cls head on the last row tile ---------------------------------
    @pl.when(hi == pl.num_programs(1) - 1)
    def _():
        f0 = gap_ref[0:1, :] * inv_hw                   # [1, COUT_PAD]
        f1 = gap_ref[1:2, :] * inv_hw
        hidden = (jnp.dot(f0, w1a_ref[...], preferred_element_type=jnp.float32)
                  + jnp.dot(f1, w1b_ref[...], preferred_element_type=jnp.float32)
                  + b1_ref[...])
        hidden = jnp.maximum(hidden, 0.0)               # [1, HID_PAD]
        logits = jnp.dot(hidden, w2_ref[...],
                         preferred_element_type=jnp.float32) + b2_ref[...]
        feat_ref[...] = hidden[None]
        out_ref[...] = logits[None]


# ---------------------------------------------------------------------------
# Parameters (true shapes) + compute-ready packing
# ---------------------------------------------------------------------------
def init_params(key, *, c_in=3, c_out=32, hidden=64, num_classes=2):
    ks = jax.random.split(key, 6)
    s = 0.05
    return {
        "conv_w": s * jax.random.normal(ks[0], (3, 3, c_in, c_out), jnp.float32),
        "conv_b": s * jax.random.normal(ks[1], (c_out,), jnp.float32),
        "fc1_w": s * jax.random.normal(ks[2], (2 * c_out, hidden), jnp.float32),
        "fc1_b": s * jax.random.normal(ks[3], (hidden,), jnp.float32),
        "fc2_w": s * jax.random.normal(ks[4], (hidden, num_classes), jnp.float32),
        "fc2_b": s * jax.random.normal(ks[5], (num_classes,), jnp.float32),
    }


def _pack_params(p):
    c_in = p["conv_w"].shape[2]
    c_out = p["conv_w"].shape[3]
    hidden = p["fc1_w"].shape[1]
    ncls = p["fc2_w"].shape[1]
    # conv weights K-packed to match the im2col slab column order:
    #   slab column  dh*CP + dw*c_in + c  <->  conv_w[dh, dw, c, :]
    wk = p["conv_w"].reshape(3, 3 * c_in, c_out)
    wk = jnp.pad(wk, ((0, 0), (0, CP - 3 * c_in), (0, COUT_PAD - c_out)))
    wc = wk.reshape(KK, COUT_PAD).astype(jnp.bfloat16)
    bc = jnp.pad(p["conv_b"], (0, COUT_PAD - c_out)).reshape(1, COUT_PAD)
    # concat folded into two dots: [feat1|feat2] @ fc1_w = feat1@W1a + feat2@W1b
    w1a = jnp.pad(p["fc1_w"][:c_out], ((0, COUT_PAD - c_out), (0, HID_PAD - hidden)))
    w1b = jnp.pad(p["fc1_w"][c_out:], ((0, COUT_PAD - c_out), (0, HID_PAD - hidden)))
    b1 = jnp.pad(p["fc1_b"], (0, HID_PAD - hidden)).reshape(1, HID_PAD)
    w2 = jnp.pad(p["fc2_w"], ((0, HID_PAD - hidden), (0, CLS_PAD - ncls)))
    b2 = jnp.pad(p["fc2_b"], (0, CLS_PAD - ncls)).reshape(1, CLS_PAD)
    return dict(wc=wc, bc=bc.astype(jnp.float32),
                w1a=w1a.astype(jnp.float32), w1b=w1b.astype(jnp.float32),
                b1=b1.astype(jnp.float32), w2=w2.astype(jnp.float32),
                b2=b2.astype(jnp.float32), hidden=hidden, ncls=ncls)


def _prep_inputs(img1, img2, *, th):
    """NCHW -> dw-folded, channel-padded, row-flattened, halo-duplicated blocks."""
    b, c_in, h, width = img1.shape
    n_h = h // th

    def fold_dw(img):
        x = jnp.transpose(img, (0, 2, 3, 1)).astype(jnp.float32)      # [b,H,W,C]
        xp = jnp.pad(x, ((0, 0), (1, 1), (1, 1), (0, 0)))             # [b,H+2,W+2,C]
        # horizontal taps folded into channels: channel index = dw*c_in + c
        xw = jnp.concatenate([xp[:, :, dw:dw + width, :] for dw in range(3)],
                             axis=-1)                                  # [b,H+2,W,3C]
        return jnp.pad(xw, ((0, 0), (0, 0), (0, 0), (0, CP - 3 * c_in)))

    x = jnp.stack([fold_dw(img1), fold_dw(img2)], axis=1)              # [b,2,H+2,W,CP]
    # halo-duplicated row-tile blocks (+2 rows of vertical halo per tile)
    blocks = [x[:, :, hi * th: hi * th + th + 2] for hi in range(n_h)]
    xb = jnp.stack(blocks, axis=2)                                     # [b,2,n_h,th+2,W,CP]
    return xb.reshape(b, 2, n_h, (th + 2) * width, CP).astype(jnp.bfloat16)


# ---------------------------------------------------------------------------
# Forward pass (semantics of SiameseFeatureNetwork.forward)
# ---------------------------------------------------------------------------
def siamese_feature_network(params, img1, img2):
    packed = _pack_params(params)
    b, _, h, width = img1.shape
    th = _pick_row_tile(h)
    n_h = h // th
    tile = th * width
    block_rows = (th + 2) * width

    xb = _prep_inputs(img1, img2, th=th)     # [b, 2, n_h, (th+2)*W, CP] bf16

    kernel = functools.partial(_siamese_kernel, tile=tile, width=width,
                               inv_hw=1.0 / float(h * width))

    flops = 2 * b * 2 * h * width * KK * COUT_PAD
    bytes_accessed = int(xb.size * 2 + KK * COUT_PAD * 2
                         + 3 * COUT_PAD * HID_PAD * 4
                         + b * (CLS_PAD + HID_PAD) * 4)

    out_p, feat_p = pl.pallas_call(
        kernel,
        out_shape=(jax.ShapeDtypeStruct((b, 1, CLS_PAD), jnp.float32),
                   jax.ShapeDtypeStruct((b, 1, HID_PAD), jnp.float32)),
        grid=(b, n_h),
        in_specs=[
            pl.BlockSpec((1, 2, 1, block_rows, CP),
                         lambda i, hi: (i, 0, hi, 0, 0)),              # row slab
            pl.BlockSpec((KK, COUT_PAD), lambda i, hi: (0, 0)),        # conv weights
            pl.BlockSpec((1, COUT_PAD), lambda i, hi: (0, 0)),         # conv bias
            pl.BlockSpec((COUT_PAD, HID_PAD), lambda i, hi: (0, 0)),   # head W1a
            pl.BlockSpec((COUT_PAD, HID_PAD), lambda i, hi: (0, 0)),   # head W1b
            pl.BlockSpec((1, HID_PAD), lambda i, hi: (0, 0)),          # head b1
            pl.BlockSpec((HID_PAD, CLS_PAD), lambda i, hi: (0, 0)),    # head W2
            pl.BlockSpec((1, CLS_PAD), lambda i, hi: (0, 0)),          # head b2
        ],
        out_specs=(
            pl.BlockSpec((1, 1, CLS_PAD), lambda i, hi: (i, 0, 0)),
            pl.BlockSpec((1, 1, HID_PAD), lambda i, hi: (i, 0, 0)),
        ),
        scratch_shapes=[
            pltpu.VMEM((2, COUT_PAD), jnp.float32),        # running GAP sums
            pltpu.VMEM((2 * tile, KK), jnp.bfloat16),      # im2col slab
        ],
        compiler_params=pltpu.CompilerParams(
            dimension_semantics=("parallel", "arbitrary"),
            vmem_limit_bytes=32 * 1024 * 1024),
        cost_estimate=pl.CostEstimate(flops=flops, transcendentals=0,
                                      bytes_accessed=bytes_accessed),
    )(xb, packed["wc"], packed["bc"], packed["w1a"], packed["w1b"],
      packed["b1"], packed["w2"], packed["b2"])

    output = out_p[:, 0, :packed["ncls"]]        # [b, num_classes]
    feature = feat_p[:, 0, :packed["hidden"]]    # [b, hidden]
    return output, feature


# ---------------------------------------------------------------------------
# Pure-JAX reference (numerical verification only)
# ---------------------------------------------------------------------------
def reference_forward(params, img1, img2):
    def bb(img):
        x = jnp.transpose(img, (0, 2, 3, 1)).astype(jnp.float32)
        y = jax.lax.conv_general_dilated(
            x, params["conv_w"], window_strides=(1, 1), padding="SAME",
            dimension_numbers=("NHWC", "HWIO", "NHWC"))
        y = jnp.maximum(y + params["conv_b"], 0.0)
        return jnp.mean(y, axis=(1, 2))
    f1, f2 = bb(img1), bb(img2)
    comb = jnp.concatenate([f1, f2], axis=-1)
    feat = jnp.maximum(comb @ params["fc1_w"] + params["fc1_b"], 0.0)
    out = feat @ params["fc2_w"] + params["fc2_b"]
    return out, feat


# ---------------------------------------------------------------------------
if __name__ == "__main__":
    key = jax.random.PRNGKey(0)
    k_img1, k_img2, k_params = jax.random.split(key, 3)

    B, C, H, W = 2, 3, 16, 16                 # small stand-in for [b, 3, 224, 224]
    img1 = jax.random.normal(k_img1, (B, C, H, W), jnp.float32)
    img2 = jax.random.normal(k_img2, (B, C, H, W), jnp.float32)
    params = init_params(k_params)

    fwd = jax.jit(siamese_feature_network)
    output, feature = fwd(params, img1, img2)
    jax.block_until_ready((output, feature))

    assert output.shape == (B, 2)
    assert feature.shape == (B, 64)

    out_ref, feat_ref = reference_forward(params, img1, img2)
    np.testing.assert_allclose(np.asarray(output), np.asarray(out_ref),
                               rtol=2e-2, atol=2e-2)
    np.testing.assert_allclose(np.asarray(feature), np.asarray(feat_ref),
                               rtol=2e-2, atol=2e-2)
    print("KERNEL_OK")
</pallas_src>

<mosaic_0001>
module attributes {stable_mosaic.version = 11 : i64} {
  func.func @_siamese_kernel(%arg0: i32, %arg1: i32, %arg2: memref<1x2x1x160x16xbf16, #tpu.memory_space<vmem>>, %arg3: memref<48x128xbf16, #tpu.memory_space<vmem>>, %arg4: memref<1x128xf32, #tpu.memory_space<vmem>>, %arg5: memref<128x128xf32, #tpu.memory_space<vmem>>, %arg6: memref<128x128xf32, #tpu.memory_space<vmem>>, %arg7: memref<1x128xf32, #tpu.memory_space<vmem>>, %arg8: memref<128x128xf32, #tpu.memory_space<vmem>>, %arg9: memref<1x128xf32, #tpu.memory_space<vmem>>, %arg10: memref<1x1x128xf32, #tpu.memory_space<vmem>>, %arg11: memref<1x1x128xf32, #tpu.memory_space<vmem>>, %arg12: memref<2x128xf32, #tpu.memory_space<vmem>>, %arg13: memref<256x48xbf16, #tpu.memory_space<vmem>>) attributes {dimension_semantics = [#tpu.dimension_semantics<parallel>, #tpu.dimension_semantics<arbitrary>], iteration_bounds = array<i64: 2, 2>, scalar_prefetch = 0 : i64, scratch_operands = 2 : i64, tpu.core_type = #tpu.core_type<tc>, window_params = [{transform_indices = @transform_0, window_bounds = array<i64: 1, 2, 1, 160, 16>}, {pipeline_mode = #tpu.pipeline_mode<synchronous>, transform_indices = @transform_1, window_bounds = array<i64: 48, 128>}, {pipeline_mode = #tpu.pipeline_mode<synchronous>, transform_indices = @transform_2, window_bounds = array<i64: 1, 128>}, {pipeline_mode = #tpu.pipeline_mode<synchronous>, transform_indices = @transform_3, window_bounds = array<i64: 128, 128>}, {pipeline_mode = #tpu.pipeline_mode<synchronous>, transform_indices = @transform_4, window_bounds = array<i64: 128, 128>}, {pipeline_mode = #tpu.pipeline_mode<synchronous>, transform_indices = @transform_5, window_bounds = array<i64: 1, 128>}, {pipeline_mode = #tpu.pipeline_mode<synchronous>, transform_indices = @transform_6, window_bounds = array<i64: 128, 128>}, {pipeline_mode = #tpu.pipeline_mode<synchronous>, transform_indices = @transform_7, window_bounds = array<i64: 1, 128>}, {transform_indices = @transform_8, window_bounds = array<i64: 1, 1, 128>}, {transform_indices = @transform_9, window_bounds = array<i64: 1, 1, 128>}]} {
    %c0_i32 = arith.constant 0 : i32
    %0 = arith.cmpi eq, %arg1, %c0_i32 : i32
    %1 = arith.extui %0 : i1 to i32
    %c0_i32_0 = arith.constant 0 : i32
    %2 = arith.cmpi ne, %1, %c0_i32_0 : i32
    scf.if %2 {
      %cst_52 = arith.constant 0.000000e+00 : f32
      %42 = vector.broadcast %cst_52 : f32 to vector<2x128xf32>
      %c0_53 = arith.constant 0 : index
      %c0_54 = arith.constant 0 : index
      %43 = vector.load %arg12[%c0_53, %c0_54] : memref<2x128xf32, #tpu.memory_space<vmem>>, vector<2x128xf32>
      tpu.vector_store %arg12[%c0_53, %c0_54], %42 {strides = array<i32>} : memref<2x128xf32, #tpu.memory_space<vmem>>, vector<2x128xf32>,
    } else {
    }
    %c0 = arith.constant 0 : index
    %c0_1 = arith.constant 0 : index
    %c0_2 = arith.constant 0 : index
    %c0_3 = arith.constant 0 : index
    %c0_4 = arith.constant 0 : index
    %3 = vector.load %arg2[%c0, %c0_1, %c0_2, %c0_3, %c0_4] : memref<1x2x1x160x16xbf16, #tpu.memory_space<vmem>>, vector<1x1x1x128x16xbf16>
    %4 = vector.shape_cast %3 : vector<1x1x1x128x16xbf16> to vector<128x16xbf16>
    %c0_5 = arith.constant 0 : index
    %c0_6 = arith.constant 0 : index
    %5 = vector.load %arg13[%c0_5, %c0_6] : memref<256x48xbf16, #tpu.memory_space<vmem>>, vector<128x16xbf16>
    tpu.vector_store %arg13[%c0_5, %c0_6], %4 {strides = array<i32>} : memref<256x48xbf16, #tpu.memory_space<vmem>>, vector<128x16xbf16>,
    %c0_7 = arith.constant 0 : index
    %c0_8 = arith.constant 0 : index
    %c0_9 = arith.constant 0 : index
    %c16 = arith.constant 16 : index
    %c0_10 = arith.constant 0 : index
    %6 = vector.load %arg2[%c0_7, %c0_8, %c0_9, %c16, %c0_10] : memref<1x2x1x160x16xbf16, #tpu.memory_space<vmem>>, vector<1x1x1x128x16xbf16>
    %7 = vector.shape_cast %6 : vector<1x1x1x128x16xbf16> to vector<128x16xbf16>
    %c0_11 = arith.constant 0 : index
    %c16_12 = arith.constant 16 : index
    %8 = vector.load %arg13[%c0_11, %c16_12] : memref<256x48xbf16, #tpu.memory_space<vmem>>, vector<128x16xbf16>
    tpu.vector_store %arg13[%c0_11, %c16_12], %7 {strides = array<i32>} : memref<256x48xbf16, #tpu.memory_space<vmem>>, vector<128x16xbf16>,
    %c0_13 = arith.constant 0 : index
    %c0_14 = arith.constant 0 : index
    %c0_15 = arith.constant 0 : index
    %c32 = arith.constant 32 : index
    %c0_16 = arith.constant 0 : index
    %9 = vector.load %arg2[%c0_13, %c0_14, %c0_15, %c32, %c0_16] : memref<1x2x1x160x16xbf16, #tpu.memory_space<vmem>>, vector<1x1x1x128x16xbf16>
    %10 = vector.shape_cast %9 : vector<1x1x1x128x16xbf16> to vector<128x16xbf16>
    %c0_17 = arith.constant 0 : index
    %c32_18 = arith.constant 32 : index
    %11 = vector.load %arg13[%c0_17, %c32_18] : memref<256x48xbf16, #tpu.memory_space<vmem>>, vector<128x16xbf16>
    tpu.vector_store %arg13[%c0_17, %c32_18], %10 {strides = array<i32>} : memref<256x48xbf16, #tpu.memory_space<vmem>>, vector<128x16xbf16>,
    %c0_19 = arith.constant 0 : index
    %c1 = arith.constant 1 : index
    %c0_20 = arith.constant 0 : index
    %c0_21 = arith.constant 0 : index
    %c0_22 = arith.constant 0 : index
    %12 = vector.load %arg2[%c0_19, %c1, %c0_20, %c0_21, %c0_22] : memref<1x2x1x160x16xbf16, #tpu.memory_space<vmem>>, vector<1x1x1x128x16xbf16>
    %13 = vector.shape_cast %12 : vector<1x1x1x128x16xbf16> to vector<128x16xbf16>
    %c128 = arith.constant 128 : index
    %c0_23 = arith.constant 0 : index
    %14 = vector.load %arg13[%c128, %c0_23] : memref<256x48xbf16, #tpu.memory_space<vmem>>, vector<128x16xbf16>
    tpu.vector_store %arg13[%c128, %c0_23], %13 {strides = array<i32>} : memref<256x48xbf16, #tpu.memory_space<vmem>>, vector<128x16xbf16>,
    %c0_24 = arith.constant 0 : index
    %c1_25 = arith.constant 1 : index
    %c0_26 = arith.constant 0 : index
    %c16_27 = arith.constant 16 : index
    %c0_28 = arith.constant 0 : index
    %15 = vector.load %arg2[%c0_24, %c1_25, %c0_26, %c16_27, %c0_28] : memref<1x2x1x160x16xbf16, #tpu.memory_space<vmem>>, vector<1x1x1x128x16xbf16>
    %16 = vector.shape_cast %15 : vector<1x1x1x128x16xbf16> to vector<128x16xbf16>
    %c128_29 = arith.constant 128 : index
    %c16_30 = arith.constant 16 : index
    %17 = vector.load %arg13[%c128_29, %c16_30] : memref<256x48xbf16, #tpu.memory_space<vmem>>, vector<128x16xbf16>
    tpu.vector_store %arg13[%c128_29, %c16_30], %16 {strides = array<i32>} : memref<256x48xbf16, #tpu.memory_space<vmem>>, vector<128x16xbf16>,
    %c0_31 = arith.constant 0 : index
    %c1_32 = arith.constant 1 : index
    %c0_33 = arith.constant 0 : index
    %c32_34 = arith.constant 32 : index
    %c0_35 = arith.constant 0 : index
    %18 = vector.load %arg2[%c0_31, %c1_32, %c0_33, %c32_34, %c0_35] : memref<1x2x1x160x16xbf16, #tpu.memory_space<vmem>>, vector<1x1x1x128x16xbf16>
    %19 = vector.shape_cast %18 : vector<1x1x1x128x16xbf16> to vector<128x16xbf16>
    %c128_36 = arith.constant 128 : index
    %c32_37 = arith.constant 32 : index
    %20 = vector.load %arg13[%c128_36, %c32_37] : memref<256x48xbf16, #tpu.memory_space<vmem>>, vector<128x16xbf16>
    tpu.vector_store %arg13[%c128_36, %c32_37], %19 {strides = array<i32>} : memref<256x48xbf16, #tpu.memory_space<vmem>>, vector<128x16xbf16>,
    %c0_38 = arith.constant 0 : index
    %c0_39 = arith.constant 0 : index
    %21 = vector.load %arg13[%c0_38, %c0_39] : memref<256x48xbf16, #tpu.memory_space<vmem>>, vector<256x48xbf16>
    %c0_40 = arith.constant 0 : index
    %c0_41 = arith.constant 0 : index
    %22 = vector.load %arg3[%c0_40, %c0_41] : memref<48x128xbf16, #tpu.memory_space<vmem>>, vector<48x128xbf16>
    %cst = arith.constant dense<0.000000e+00> : vector<256x128xf32>
    %23 = tpu.matmul %21, %22, %cst {dimension_numbers = #tpu.dot_dimension_numbers<[1], [0], [0], [1], [0, 0, 1, 1], [], []>} : vector<256x48xbf16>, vector<48x128xbf16>, vector<256x128xf32> -> vector<256x128xf32>
    %c0_42 = arith.constant 0 : index
    %c0_43 = arith.constant 0 : index
    %24 = vector.load %arg4[%c0_42, %c0_43] : memref<1x128xf32, #tpu.memory_space<vmem>>, vector<1x128xf32>
    %25 = vector.broadcast %24 : vector<1x128xf32> to vector<256x128xf32>
    %26 = arith.addf %23, %25 : vector<256x128xf32>
    %cst_44 = arith.constant 0.000000e+00 : f32
    %27 = vector.broadcast %cst_44 : f32 to vector<256x128xf32>
    %28 = arith.maximumf %26, %27 : vector<256x128xf32>
    %29 = vector.extract_strided_slice %28 {offsets = [0, 0], sizes = [128, 128], strides = [1, 1]} : vector<256x128xf32> to vector<128x128xf32>
    %cst_45 = arith.constant dense<0.000000e+00> : vector<128xf32>
    %30 = vector.multi_reduction <add>, %29, %cst_45 [0] : vector<128x128xf32> to vector<128xf32>
    %31 = vector.shape_cast %30 : vector<128xf32> to vector<1x128xf32>
    %32 = vector.extract_strided_slice %28 {offsets = [128, 0], sizes = [128, 128], strides = [1, 1]} : vector<256x128xf32> to vector<128x128xf32>
    %cst_46 = arith.constant dense<0.000000e+00> : vector<128xf32>
    %33 = vector.multi_reduction <add>, %32, %cst_46 [0] : vector<128x128xf32> to vector<128xf32>
    %34 = vector.shape_cast %33 : vector<128xf32> to vector<1x128xf32>
    %c0_47 = arith.constant 0 : index
    %c0_48 = arith.constant 0 : index
    %35 = vector.load %arg12[%c0_47, %c0_48] : memref<2x128xf32, #tpu.memory_space<vmem>>, vector<2x128xf32>
    %36 = tpu.concatenate %31, %34 in 0 : vector<1x128xf32>, vector<1x128xf32> -> vector<2x128xf32>
    %37 = arith.addf %35, %36 : vector<2x128xf32>
    %c0_49 = arith.constant 0 : index
    %c0_50 = arith.constant 0 : index
    %38 = vector.load %arg12[%c0_49, %c0_50] : memref<2x128xf32, #tpu.memory_space<vmem>>, vector<2x128xf32>
    tpu.vector_store %arg12[%c0_49, %c0_50], %37 {strides = array<i32>} : memref<2x128xf32, #tpu.memory_space<vmem>>, vector<2x128xf32>,
    %c1_i32 = arith.constant 1 : i32
    %39 = arith.cmpi eq, %arg1, %c1_i32 : i32
    %40 = arith.extui %39 : i1 to i32
    %c0_i32_51 = arith.constant 0 : i32
    %41 = arith.cmpi ne, %40, %c0_i32_51 : i32
    scf.if %41 {
      %c0_52 = arith.constant 0 : index
      %c0_53 = arith.constant 0 : index
      %42 = vector.load %arg12[%c0_52, %c0_53] : memref<2x128xf32, #tpu.memory_space<vmem>>, vector<1x128xf32>
      %cst_54 = arith.constant 3.906250e-03 : f32
      %43 = vector.broadcast %cst_54 : f32 to vector<1x128xf32>
      %44 = arith.mulf %42, %43 : vector<1x128xf32>
      %c1_55 = arith.constant 1 : index
      %c0_56 = arith.constant 0 : index
      %45 = vector.load %arg12[%c1_55, %c0_56] : memref<2x128xf32, #tpu.memory_space<vmem>>, vector<1x128xf32>
      %cst_57 = arith.constant 3.906250e-03 : f32
      %46 = vector.broadcast %cst_57 : f32 to vector<1x128xf32>
      %47 = arith.mulf %45, %46 : vector<1x128xf32>
      %c0_58 = arith.constant 0 : index
      %c0_59 = arith.constant 0 : index
      %48 = vector.load %arg5[%c0_58, %c0_59] : memref<128x128xf32, #tpu.memory_space<vmem>>, vector<128x128xf32>
      %cst_60 = arith.constant dense<0.000000e+00> : vector<1x128xf32>
      %49 = tpu.matmul %44, %48, %cst_60 {dimension_numbers = #tpu.dot_dimension_numbers<[1], [0], [0], [1], [0, 0, 1, 1], [], []>} : vector<1x128xf32>, vector<128x128xf32>, vector<1x128xf32> -> vector<1x128xf32>
      %c0_61 = arith.constant 0 : index
      %c0_62 = arith.constant 0 : index
      %50 = vector.load %arg6[%c0_61, %c0_62] : memref<128x128xf32, #tpu.memory_space<vmem>>, vector<128x128xf32>
      %cst_63 = arith.constant dense<0.000000e+00> : vector<1x128xf32>
      %51 = tpu.matmul %47, %50, %cst_63 {dimension_numbers = #tpu.dot_dimension_numbers<[1], [0], [0], [1], [0, 0, 1, 1], [], []>} : vector<1x128xf32>, vector<128x128xf32>, vector<1x128xf32> -> vector<1x128xf32>
      %52 = arith.addf %49, %51 : vector<1x128xf32>
      %c0_64 = arith.constant 0 : index
      %c0_65 = arith.constant 0 : index
      %53 = vector.load %arg7[%c0_64, %c0_65] : memref<1x128xf32, #tpu.memory_space<vmem>>, vector<1x128xf32>
      %54 = arith.addf %52, %53 : vector<1x128xf32>
      %cst_66 = arith.constant 0.000000e+00 : f32
      %55 = vector.broadcast %cst_66 : f32 to vector<1x128xf32>
      %56 = arith.maximumf %54, %55 : vector<1x128xf32>
      %c0_67 = arith.constant 0 : index
      %c0_68 = arith.constant 0 : index
      %57 = vector.load %arg8[%c0_67, %c0_68] : memref<128x128xf32, #tpu.memory_space<vmem>>, vector<128x128xf32>
      %cst_69 = arith.constant dense<0.000000e+00> : vector<1x128xf32>
      %58 = tpu.matmul %56, %57, %cst_69 {dimension_numbers = #tpu.dot_dimension_numbers<[1], [0], [0], [1], [0, 0, 1, 1], [], []>} : vector<1x128xf32>, vector<128x128xf32>, vector<1x128xf32> -> vector<1x128xf32>
      %c0_70 = arith.constant 0 : index
      %c0_71 = arith.constant 0 : index
      %59 = vector.load %arg9[%c0_70, %c0_71] : memref<1x128xf32, #tpu.memory_space<vmem>>, vector<1x128xf32>
      %60 = arith.addf %58, %59 : vector<1x128xf32>
      %61 = vector.shape_cast %56 : vector<1x128xf32> to vector<1x1x128xf32>
      %c0_72 = arith.constant 0 : index
      %c0_73 = arith.constant 0 : index
      %c0_74 = arith.constant 0 : index
      %62 = vector.load %arg11[%c0_72, %c0_73, %c0_74] : memref<1x1x128xf32, #tpu.memory_space<vmem>>, vector<1x1x128xf32>
      tpu.vector_store %arg11[%c0_72, %c0_73, %c0_74], %61 {strides = array<i32>} : memref<1x1x128xf32, #tpu.memory_space<vmem>>, vector<1x1x128xf32>,
      %63 = vector.shape_cast %60 : vector<1x128xf32> to vector<1x1x128xf32>
      %c0_75 = arith.constant 0 : index
      %c0_76 = arith.constant 0 : index
      %c0_77 = arith.constant 0 : index
      %64 = vector.load %arg10[%c0_75, %c0_76, %c0_77] : memref<1x1x128xf32, #tpu.memory_space<vmem>>, vector<1x1x128xf32>
      tpu.vector_store %arg10[%c0_75, %c0_76, %c0_77], %63 {strides = array<i32>} : memref<1x1x128xf32, #tpu.memory_space<vmem>>, vector<1x1x128xf32>,
    } else {
    }
    return
  }
  func.func @transform_0(%arg0: i32, %arg1: i32) -> (i32, i32, i32, i32, i32) {
    %c0_i32 = arith.constant 0 : i32
    %c0_i32_0 = arith.constant 0 : i32
    %c0_i32_1 = arith.constant 0 : i32
    %c0_i32_2 = arith.constant 0 : i32
    return %arg0, %c0_i32, %arg1, %c0_i32_0, %c0_i32_1 : i32, i32, i32, i32, i32
  }
  func.func @transform_1(%arg0: i32, %arg1: i32) -> (i32, i32) {
    %c0_i32 = arith.constant 0 : i32
    %c0_i32_0 = arith.constant 0 : i32
    %c0_i32_1 = arith.constant 0 : i32
    return %c0_i32, %c0_i32_0 : i32, i32
  }
  func.func @transform_2(%arg0: i32, %arg1: i32) -> (i32, i32) {
    %c0_i32 = arith.constant 0 : i32
    %c0_i32_0 = arith.constant 0 : i32
    %c0_i32_1 = arith.constant 0 : i32
    return %c0_i32, %c0_i32_0 : i32, i32
  }
  func.func @transform_3(%arg0: i32, %arg1: i32) -> (i32, i32) {
    %c0_i32 = arith.constant 0 : i32
    %c0_i32_0 = arith.constant 0 : i32
    %c0_i32_1 = arith.constant 0 : i32
    return %c0_i32, %c0_i32_0 : i32, i32
  }
  func.func @transform_4(%arg0: i32, %arg1: i32) -> (i32, i32) {
    %c0_i32 = arith.constant 0 : i32
    %c0_i32_0 = arith.constant 0 : i32
    %c0_i32_1 = arith.constant 0 : i32
    return %c0_i32, %c0_i32_0 : i32, i32
  }
  func.func @transform_5(%arg0: i32, %arg1: i32) -> (i32, i32) {
    %c0_i32 = arith.constant 0 : i32
    %c0_i32_0 = arith.constant 0 : i32
    %c0_i32_1 = arith.constant 0 : i32
    return %c0_i32, %c0_i32_0 : i32, i32
  }
  func.func @transform_6(%arg0: i32, %arg1: i32) -> (i32, i32) {
    %c0_i32 = arith.constant 0 : i32
    %c0_i32_0 = arith.constant 0 : i32
    %c0_i32_1 = arith.constant 0 : i32
    return %c0_i32, %c0_i32_0 : i32, i32
  }
  func.func @transform_7(%arg0: i32, %arg1: i32) -> (i32, i32) {
    %c0_i32 = arith.constant 0 : i32
    %c0_i32_0 = arith.constant 0 : i32
    %c0_i32_1 = arith.constant 0 : i32
    return %c0_i32, %c0_i32_0 : i32, i32
  }
  func.func @transform_8(%arg0: i32, %arg1: i32) -> (i32, i32, i32) {
    %c0_i32 = arith.constant 0 : i32
    %c0_i32_0 = arith.constant 0 : i32
    %c0_i32_1 = arith.constant 0 : i32
    return %arg0, %c0_i32, %c0_i32_0 : i32, i32, i32
  }
  func.func @transform_9(%arg0: i32, %arg1: i32) -> (i32, i32, i32) {
    %c0_i32 = arith.constant 0 : i32
    %c0_i32_0 = arith.constant 0 : i32
    %c0_i32_1 = arith.constant 0 : i32
    return %arg0, %c0_i32, %c0_i32_0 : i32, i32, i32
  }
}

</mosaic_0001>

<llo_original>
// kernel: siamese_feature_network.1
$region0: #{siamese_feature_network.1}
  #allocation0 [shape = 'u32[]', space=smem, size = 0x4, offset = 0x4, fixed_abs, tag = 'smem constant byte address 0x4 - core index']
  #allocation1 [shape = 'u32[144,128]{1,0:T(1,128)}', space=vmem, size = 0x12000, scoped, tag = 'internal scratch']
  #allocation2 [shape = 'f32[2,128]{1,0:T(2,128)}', space=vmem, size = 0x400, scoped, tag = 'scratch operand']
  #allocation3 [shape = 'bf16[256,48]{1,0:T(16,128)(2,1)}', space=vmem, size = 0x10000, scoped, tag = 'scratch operand']
  %s0 = inlined_call_operand.vmem [shape: bf16[2,2,2,160,16], index: 0, kind: input, shape index: {}]
  %s1 = inlined_call_operand.vmem [shape: bf16[48,128], index: 1, kind: input, shape index: {}]
  %s2 = inlined_call_operand.vmem [shape: f32[1,128], index: 2, kind: input, shape index: {}]
  %s3 = inlined_call_operand.vmem [shape: f32[128,128], index: 3, kind: input, shape index: {}]
  %s4 = inlined_call_operand.vmem [shape: f32[128,128], index: 4, kind: input, shape index: {}]
  %s5 = inlined_call_operand.vmem [shape: f32[1,128], index: 5, kind: input, shape index: {}]
  %s6 = inlined_call_operand.vmem [shape: f32[128,128], index: 6, kind: input, shape index: {}]
  %s7 = inlined_call_operand.vmem [shape: f32[1,128], index: 7, kind: input, shape index: {}]
  %s8 = inlined_call_operand.hbm [shape: f32[2,1,128], index: 8, kind: output, shape index: {0}]
  %s9 = inlined_call_operand.hbm [shape: f32[2,1,128], index: 9, kind: output, shape index: {1}]
  %10 = xla_tuple %s8, %s9
  %s11 = sld [smem:[#allocation0]]
  $region122: #{siamese_feature_network.1} parent=0
    _
  %s13 = ssub.s32 1, %s11
  %s14 = scalar_select 0, %s13, %s11
  $region1: #{siamese_feature_network.1} parent=0
    #allocation4 [shape = 'u8[163840]{0}', space=vmem, size = 0x28000, scoped, tag = 'input window, operand 0']
    #allocation5 [shape = 'u8[1024]{0}', space=vmem, size = 0x400, scoped, tag = 'output window, operand 0']
    #allocation6 [shape = 's32[2]{0}', space=sflag, size = 0x8, scoped, tag = 'scoped memory for siamese_feature_network.1']
    #allocation7 [shape = 'u8[1024]{0}', space=vmem, size = 0x400, scoped, tag = 'output window, operand 1']
    #allocation8 [shape = 's32[2]{0}', space=sflag, size = 0x8, scoped, tag = 'scoped memory for siamese_feature_network.1']
    %15 = vsyncpa [#allocation6], 0
    %s16 = scalar_lea.sflag [#allocation6], 1
    %17 = vsyncpa %s16, 0
    %18 = vsyncpa [#allocation8], 0
    %s19 = scalar_lea.sflag [#allocation8], 1
    %20 = vsyncpa %s19, 0
    loop: start=0, step=1, limit=6
    $region2: #{siamese_feature_network.1} parent=1 // loop_pre_header
      _
    $region3: #{siamese_feature_network.1} parent=1 // loop_header
      %s22 = sphi 0, %s26
      %p23 = scmp.ge.s32.totalorder %s22, 6
      %s29 = sphi 0, %s41
      %s30 = sphi 0, %s37
      %s31 = sphi 0, %s29
      %s32 = sphi 0, %s30
      %s33 = sphi 0, %s31
      %s34 = sphi 0, %s32
      %s46 = sphi 0, %s48
      %s49 = sphi 0, %s46
      %s50 = sphi 0, %s49
      %s66 = sphi 0, %s50
      %s70 = sphi 0, %s70
      %s72 = sphi 0, %s70
      %s73 = sphi 0, %s72
      %s87 = sphi 0, %s73
      %s91 = sphi 0, %s91
      %s93 = sphi 0, %s91
      %s94 = sphi 0, %s93
      %s108 = sphi 0, %s94
      %s112 = sphi 0, %s112
      %s114 = sphi 0, %s112
      %s115 = sphi 0, %s114
      %s129 = sphi 0, %s115
      %s133 = sphi 0, %s133
      %s135 = sphi 0, %s133
      %s136 = sphi 0, %s135
      %s150 = sphi 0, %s136
      %s154 = sphi 0, %s154
      %s156 = sphi 0, %s154
      %s157 = sphi 0, %s156
      %s171 = sphi 0, %s157
      %s175 = sphi 0, %s175
      %s177 = sphi 0, %s175
      %s178 = sphi 0, %s177
      %s192 = sphi 0, %s178
      %s196 = sphi 0, %s196
      %s198 = sphi 0, %s196
      %s199 = sphi 0, %s198
      %s213 = sphi 0, %s199
      %s219 = sphi 0, %s221
      %s222 = sphi 0, %s219
      %s223 = sphi 0, %s222
      %s239 = sphi 0, %s223
      %s245 = sphi 0, %s247
      %s248 = sphi 0, %s245
      %s249 = sphi 0, %s248
      %s265 = sphi 0, %s249
    $region4: #{siamese_feature_network.1} parent=1 // loop_header_branch
      %25 = sbr.rel (%p23) target = $region8
    $region5: #{siamese_feature_network.1} parent=1 // loop_body
      %s27 = ssub.s32 %s22, 1
      %s28 = ssub.s32 %s22, 2
      %s35 = sadd.s32 1, %s30
      %p36 = scmp.ge.s32.totalorder %s35, 2
      %s37 = scalar_select %p36, 0, %s35
      %s38 = sadd.s32 1, %s29
      %s39 = scalar_select %p36, %s38, %s29
      %p40 = scmp.ge.s32.totalorder %s39, 2
      %s41 = scalar_select %p40, 0, %s39
      %s42 = ssub.s32 %s29, %s41
      %s43 = ssub.s32 %s30, %s37
      %s44 = sor.u32 %s42, %s43
      %p45 = scmp.eq.s32.totalorder %s44, 0
      %s47 = sadd.s32 %s46, 1
      %s48 = scalar_select %p45, %s46, %s47
      %p51 = pneg %p45
      %p52 = scmp.eq.s32.totalorder %s22, 3
      %p53 = por %p51, %p52
      %p54 = scmp.ne.s32.totalorder %s46, %s49
      %p55 = scmp.eq.s32.totalorder %s22, 0
      %p56 = por %p54, %p55
      %p57 = scmp.ne.s32.totalorder %s46, %s49
      %p58 = scmp.eq.s32.totalorder %s27, 3
      %p59 = por %p57, %p58
      %p60 = scmp.ne.s32.totalorder %s49, %s50
      %p61 = scmp.eq.s32.totalorder %s27, 0
      %p62 = por %p60, %p61
      %p63 = scmp.ne.s32.totalorder %s49, %s50
      %p64 = scmp.eq.s32.totalorder %s28, 3
      %p65 = por %p63, %p64
      %p67 = scmp.ne.s32.totalorder %s50, %s66
      %p68 = scmp.eq.s32.totalorder %s28, 0
      %p69 = por %p67, %p68
      %s71 = sadd.s32 %s70, 1
      %p74 = scmp.eq.s32.totalorder %s22, 3
      %p75 = scmp.ne.s32.totalorder %s70, %s72
      %p76 = scmp.eq.s32.totalorder %s22, 0
      %p77 = por %p75, %p76
      %p78 = scmp.ne.s32.totalorder %s70, %s72
      %p79 = scmp.eq.s32.totalorder %s27, 3
      %p80 = por %p78, %p79
      %p81 = scmp.ne.s32.totalorder %s72, %s73
      %p82 = scmp.eq.s32.totalorder %s27, 0
      %p83 = por %p81, %p82
      %p84 = scmp.ne.s32.totalorder %s72, %s73
      %p85 = scmp.eq.s32.totalorder %s28, 3
      %p86 = por %p84, %p85
      %p88 = scmp.ne.s32.totalorder %s73, %s87
      %p89 = scmp.eq.s32.totalorder %s28, 0
      %p90 = por %p88, %p89
      %s92 = sadd.s32 %s91, 1
      %p95 = scmp.eq.s32.totalorder %s22, 3
      %p96 = scmp.ne.s32.totalorder %s91, %s93
      %p97 = scmp.eq.s32.totalorder %s22, 0
      %p98 = por %p96, %p97
      %p99 = scmp.ne.s32.totalorder %s91, %s93
      %p100 = scmp.eq.s32.totalorder %s27, 3
      %p101 = por %p99, %p100
      %p102 = scmp.ne.s32.totalorder %s93, %s94
      %p103 = scmp.eq.s32.totalorder %s27, 0
      %p104 = por %p102, %p103
      %p105 = scmp.ne.s32.totalorder %s93, %s94
      %p106 = scmp.eq.s32.totalorder %s28, 3
      %p107 = por %p105, %p106
      %p109 = scmp.ne.s32.totalorder %s94, %s108
      %p110 = scmp.eq.s32.totalorder %s28, 0
      %p111 = por %p109, %p110
      %s113 = sadd.s32 %s112, 1
      %p116 = scmp.eq.s32.totalorder %s22, 3
      %p117 = scmp.ne.s32.totalorder %s112, %s114
      %p118 = scmp.eq.s32.totalorder %s22, 0
      %p119 = por %p117, %p118
      %p120 = scmp.ne.s32.totalorder %s112, %s114
      %p121 = scmp.eq.s32.totalorder %s27, 3
      %p122 = por %p120, %p121
      %p123 = scmp.ne.s32.totalorder %s114, %s115
      %p124 = scmp.eq.s32.totalorder %s27, 0
      %p125 = por %p123, %p124
      %p126 = scmp.ne.s32.totalorder %s114, %s115
      %p127 = scmp.eq.s32.totalorder %s28, 3
      %p128 = por %p126, %p127
      %p130 = scmp.ne.s32.totalorder %s115, %s129
      %p131 = scmp.eq.s32.totalorder %s28, 0
      %p132 = por %p130, %p131
      %s134 = sadd.s32 %s133, 1
      %p137 = scmp.eq.s32.totalorder %s22, 3
      %p138 = scmp.ne.s32.totalorder %s133, %s135
      %p139 = scmp.eq.s32.totalorder %s22, 0
      %p140 = por %p138, %p139
      %p141 = scmp.ne.s32.totalorder %s133, %s135
      %p142 = scmp.eq.s32.totalorder %s27, 3
      %p143 = por %p141, %p142
      %p144 = scmp.ne.s32.totalorder %s135, %s136
      %p145 = scmp.eq.s32.totalorder %s27, 0
      %p146 = por %p144, %p145
      %p147 = scmp.ne.s32.totalorder %s135, %s136
      %p148 = scmp.eq.s32.totalorder %s28, 3
      %p149 = por %p147, %p148
      %p151 = scmp.ne.s32.totalorder %s136, %s150
      %p152 = scmp.eq.s32.totalorder %s28, 0
      %p153 = por %p151, %p152
      %s155 = sadd.s32 %s154, 1
      %p158 = scmp.eq.s32.totalorder %s22, 3
      %p159 = scmp.ne.s32.totalorder %s154, %s156
      %p160 = scmp.eq.s32.totalorder %s22, 0
      %p161 = por %p159, %p160
      %p162 = scmp.ne.s32.totalorder %s154, %s156
      %p163 = scmp.eq.s32.totalorder %s27, 3
      %p164 = por %p162, %p163
      %p165 = scmp.ne.s32.totalorder %s156, %s157
      %p166 = scmp.eq.s32.totalorder %s27, 0
      %p167 = por %p165, %p166
      %p168 = scmp.ne.s32.totalorder %s156, %s157
      %p169 = scmp.eq.s32.totalorder %s28, 3
      %p170 = por %p168, %p169
      %p172 = scmp.ne.s32.totalorder %s157, %s171
      %p173 = scmp.eq.s32.totalorder %s28, 0
      %p174 = por %p172, %p173
      %s176 = sadd.s32 %s175, 1
      %p179 = scmp.eq.s32.totalorder %s22, 3
      %p180 = scmp.ne.s32.totalorder %s175, %s177
      %p181 = scmp.eq.s32.totalorder %s22, 0
      %p182 = por %p180, %p181
      %p183 = scmp.ne.s32.totalorder %s175, %s177
      %p184 = scmp.eq.s32.totalorder %s27, 3
      %p185 = por %p183, %p184
      %p186 = scmp.ne.s32.totalorder %s177, %s178
      %p187 = scmp.eq.s32.totalorder %s27, 0
      %p188 = por %p186, %p187
      %p189 = scmp.ne.s32.totalorder %s177, %s178
      %p190 = scmp.eq.s32.totalorder %s28, 3
      %p191 = por %p189, %p190
      %p193 = scmp.ne.s32.totalorder %s178, %s192
      %p194 = scmp.eq.s32.totalorder %s28, 0
      %p195 = por %p193, %p194
      %s197 = sadd.s32 %s196, 1
      %p200 = scmp.eq.s32.totalorder %s22, 3
      %p201 = scmp.ne.s32.totalorder %s196, %s198
      %p202 = scmp.eq.s32.totalorder %s22, 0
      %p203 = por %p201, %p202
      %p204 = scmp.ne.s32.totalorder %s196, %s198
      %p205 = scmp.eq.s32.totalorder %s27, 3
      %p206 = por %p204, %p205
      %p207 = scmp.ne.s32.totalorder %s198, %s199
      %p208 = scmp.eq.s32.totalorder %s27, 0
      %p209 = por %p207, %p208
      %p210 = scmp.ne.s32.totalorder %s198, %s199
      %p211 = scmp.eq.s32.totalorder %s28, 3
      %p212 = por %p210, %p211
      %p214 = scmp.ne.s32.totalorder %s199, %s213
      %p215 = scmp.eq.s32.totalorder %s28, 0
      %p216 = por %p214, %p215
      %s217 = ssub.s32 %s29, %s41
      %p218 = scmp.eq.s32.totalorder %s217, 0
      %s220 = sadd.s32 %s219, 1
      %s221 = scalar_select %p218, %s219, %s220
      %p224 = pneg %p218
      %p225 = scmp.eq.s32.totalorder %s22, 3
      %p226 = por %p224, %p225
      %p227 = scmp.ne.s32.totalorder %s219, %s222
      %p228 = scmp.eq.s32.totalorder %s22, 0
      %p229 = por %p227, %p228
      %p230 = scmp.ne.s32.totalorder %s219, %s222
      %p231 = scmp.eq.s32.totalorder %s27, 3
      %p232 = por %p230, %p231
      %p233 = scmp.ne.s32.totalorder %s222, %s223
      %p234 = scmp.eq.s32.totalorder %s27, 0
      %p235 = por %p233, %p234
      %p236 = scmp.ne.s32.totalorder %s222, %s223
      %p237 = scmp.eq.s32.totalorder %s28, 3
      %p238 = por %p236, %p237
      %p240 = scmp.ne.s32.totalorder %s223, %s239
      %p241 = scmp.eq.s32.totalorder %s28, 0
      %p242 = por %p240, %p241
      %s243 = ssub.s32 %s29, %s41
      %p244 = scmp.eq.s32.totalorder %s243, 0
      %s246 = sadd.s32 %s245, 1
      %s247 = scalar_select %p244, %s245, %s246
      %p250 = pneg %p244
      %p251 = scmp.eq.s32.totalorder %s22, 3
      %p252 = por %p250, %p251
      %p253 = scmp.ne.s32.totalorder %s245, %s248
      %p254 = scmp.eq.s32.totalorder %s22, 0
      %p255 = por %p253, %p254
      %p256 = scmp.ne.s32.totalorder %s245, %s248
      %p257 = scmp.eq.s32.totalorder %s27, 3
      %p258 = por %p256, %p257
      %p259 = scmp.ne.s32.totalorder %s248, %s249
      %p260 = scmp.eq.s32.totalorder %s27, 0
      %p261 = por %p259, %p260
      %p262 = scmp.ne.s32.totalorder %s248, %s249
      %p263 = scmp.eq.s32.totalorder %s28, 3
      %p264 = por %p262, %p263
      %p266 = scmp.ne.s32.totalorder %s249, %s265
      %p267 = scmp.eq.s32.totalorder %s28, 0
      %p268 = por %p266, %p267
      %p269 = scmp.le.s32.totalorder 1, %s22
      %p270 = scmp.lt.s32.totalorder %s22, 5
      %p271 = pnand %p269, %p270
      %p272 = pneg %p271
      // Predicated region
      $region9: #{siamese_feature_network.1} parent=5 // pred_check
        _
      $region10: #{siamese_feature_network.1} parent=5 // pred_check_branch
        %274 = sbr.rel (%p271) target = $region12
      $region11: #{siamese_feature_network.1} parent=5 // pred_region
        %s275 = ssub.s32 %s22, 1
        // Predicated region
        $region13: #{siamese_feature_network.1} parent=11 // pred_check
          %p276 = pneg %p83
        $region14: #{siamese_feature_network.1} parent=11 // pred_check_branch
          %278 = sbr.rel (%p276) target = $region16
        $region15: #{siamese_feature_network.1} parent=11 // pred_region
          _
        $region16: #{siamese_feature_network.1} parent=11 // pred_fallthru
          _
        // Predicated region
        $region17: #{siamese_feature_network.1} parent=11 // pred_check
          %p279 = pneg %p104
        $region18: #{siamese_feature_network.1} parent=11 // pred_check_branch
          %281 = sbr.rel (%p279) target = $region20
        $region19: #{siamese_feature_network.1} parent=11 // pred_region
          _
        $region20: #{siamese_feature_network.1} parent=11 // pred_fallthru
          _
        // Predicated region
        $region21: #{siamese_feature_network.1} parent=11 // pred_check
          %p282 = pneg %p125
        $region22: #{siamese_feature_network.1} parent=11 // pred_check_branch
          %284 = sbr.rel (%p282) target = $region24
        $region23: #{siamese_feature_network.1} parent=11 // pred_region
          _
        $region24: #{siamese_feature_network.1} parent=11 // pred_fallthru
          _
        // Predicated region
        $region25: #{siamese_feature_network.1} parent=11 // pred_check
          %p285 = pneg %p146
        $region26: #{siamese_feature_network.1} parent=11 // pred_check_branch
          %287 = sbr.rel (%p285) target = $region28
        $region27: #{siamese_feature_network.1} parent=11 // pred_region
          _
        $region28: #{siamese_feature_network.1} parent=11 // pred_fallthru
          _
        // Predicated region
        $region29: #{siamese_feature_network.1} parent=11 // pred_check
          %p288 = pneg %p167
        $region30: #{siamese_feature_network.1} parent=11 // pred_check_branch
          %290 = sbr.rel (%p288) target = $region32
        $region31: #{siamese_feature_network.1} parent=11 // pred_region
          _
        $region32: #{siamese_feature_network.1} parent=11 // pred_fallthru
          _
        // Predicated region
        $region33: #{siamese_feature_network.1} parent=11 // pred_check
          %p291 = pneg %p188
        $region34: #{siamese_feature_network.1} parent=11 // pred_check_branch
          %293 = sbr.rel (%p291) target = $region36
        $region35: #{siamese_feature_network.1} parent=11 // pred_region
          _
        $region36: #{siamese_feature_network.1} parent=11 // pred_fallthru
          _
        // Predicated region
        $region37: #{siamese_feature_network.1} parent=11 // pred_check
          %p294 = pneg %p209
        $region38: #{siamese_feature_network.1} parent=11 // pred_check_branch
          %296 = sbr.rel (%p294) target = $region40
        $region39: #{siamese_feature_network.1} parent=11 // pred_region
          _
        $region40: #{siamese_feature_network.1} parent=11 // pred_fallthru
          _
      $region12: #{siamese_feature_network.1} parent=5 // pred_fallthru
        _
      %p297 = scmp.lt.s32.totalorder %s22, 4
      // Predicated region
      $region41: #{siamese_feature_network.1} parent=5 // pred_check
        %p298 = pneg %p297
      $region42: #{siamese_feature_network.1} parent=5 // pred_check_branch
        %300 = sbr.rel (%p298) target = $region44
      $region43: #{siamese_feature_network.1} parent=5 // pred_region
        // Predicated region
        $region45: #{siamese_feature_network.1} parent=43 // pred_check
          %p301 = pneg %p56
        $region46: #{siamese_feature_network.1} parent=43 // pred_check_branch
          %303 = sbr.rel (%p301) target = $region48
        $region47: #{siamese_feature_network.1} parent=43 // pred_region
          %s304 = sand.u32 %s46, 1
          %s305 = sand.u32 %s46, 1
          %s306 = smul.addr %s305, 160
          %s307 = scalar_lea.vmem [#allocation4], %s306
          %s308 = smul.addr %s30, 20
          %s309 = smul.addr %s29, 80
          %s310 = sadd.s32 %s308, %s309
          %s311 = smul.addr %s310, 4
          %s312 = scalar_lea.vmem %s0, %s311
          // Predicated region
          $region49: #{siamese_feature_network.1} parent=47 // pred_check
            _
          $region50: #{siamese_feature_network.1} parent=47 // pred_check_branch
            %314 = sbr.rel (0) target = $region52
          $region51: #{siamese_feature_network.1} parent=47 // pred_region
            // Predicated region
            $region53: #{siamese_feature_network.1} parent=51 // pred_check
              _
            $region54: #{siamese_feature_network.1} parent=51 // pred_check_branch
              %316 = sbr.rel target = $region56
            $region55: #{siamese_feature_network.1} parent=51 // pred_region
              // Predicated region
              $region68: #{siamese_feature_network.1} parent=55 // pred_check
                _
              $region69: #{siamese_feature_network.1} parent=55 // pred_check_branch
                %409 = sbr.rel (0) target = $region71
              $region70: #{siamese_feature_network.1} parent=55 // pred_region
                loop: start=0, step=1, limit=1
                $region72: #{siamese_feature_network.1} parent=70 // loop_pre_header
                  _
                $region73: #{siamese_feature_network.1} parent=70 // loop_header
                  %s411 = sphi 0, %s415
                  %p412 = scmp.ge.s32.totalorder %s411, 1
                  %s416 = sphi %s312, %s312
                  %s417 = sphi %s307, %s307
                $region74: #{siamese_feature_network.1} parent=70 // loop_header_branch
                  %414 = sbr.rel (%p412) target = $region78
                $region75: #{siamese_feature_network.1} parent=70 // loop_body
                  _
                $region76: #{siamese_feature_network.1} parent=70 // loop_footer
                  %s415 = sadd.s32 1, %s411
                $region77: #{siamese_feature_network.1} parent=70 // loop_footer_branch
                  %410 = sbr.rel target = $region73
                $region78: #{siamese_feature_network.1} parent=70 // loop_exit
                  _
                loop: start=0, step=1, limit=1
                $region79: #{siamese_feature_network.1} parent=70 // loop_pre_header
                  _
                $region80: #{siamese_feature_network.1} parent=70 // loop_header
                  %s420 = sphi 0, %s424
                  %p421 = scmp.ge.s32.totalorder %s420, 1
                  %s425 = sphi %s312, %s312
                  %s426 = sphi %s307, %s307
                $region81: #{siamese_feature_network.1} parent=70 // loop_header_branch
                  %423 = sbr.rel (%p421) target = $region85
                $region82: #{siamese_feature_network.1} parent=70 // loop_body
                  %v427 = vld [vmem:[%s425] sm:$0xf]
                  %428 = vst [vmem:[%s426] sm:$0xf] %v427
                  %v429 = vld [vmem:[%s425 + $0x4] sm:$0xf]
                  %430 = vst [vmem:[%s426 + $0x4] sm:$0xf] %v429
                  %v431 = vld [vmem:[%s425 + $0x8] sm:$0xf]
                  %432 = vst [vmem:[%s426 + $0x8] sm:$0xf] %v431
                  %v433 = vld [vmem:[%s425 + $0xc] sm:$0xf]
                  %434 = vst [vmem:[%s426 + $0xc] sm:$0xf] %v433
                  %v435 = vld [vmem:[%s425 + $0x10] sm:$0xf]
                  %436 = vst [vmem:[%s426 + $0x10] sm:$0xf] %v435
                  %v437 = vld [vmem:[%s425 + $0x14] sm:$0xf]
                  %438 = vst [vmem:[%s426 + $0x14] sm:$0xf] %v437
                  %v439 = vld [vmem:[%s425 + $0x18] sm:$0xf]
                  %440 = vst [vmem:[%s426 + $0x18] sm:$0xf] %v439
                  %v441 = vld [vmem:[%s425 + $0x1c] sm:$0xf]
                  %442 = vst [vmem:[%s426 + $0x1c] sm:$0xf] %v441
                  %v443 = vld [vmem:[%s425 + $0x20] sm:$0xf]
                  %444 = vst [vmem:[%s426 + $0x20] sm:$0xf] %v443
                  %v445 = vld [vmem:[%s425 + $0x24] sm:$0xf]
                  %446 = vst [vmem:[%s426 + $0x24] sm:$0xf] %v445
                  %v447 = vld [vmem:[%s425 + $0x28] sm:$0xf]
                  %448 = vst [vmem:[%s426 + $0x28] sm:$0xf] %v447
                  %v449 = vld [vmem:[%s425 + $0x2c] sm:$0xf]
                  %450 = vst [vmem:[%s426 + $0x2c] sm:$0xf] %v449
                  %v451 = vld [vmem:[%s425 + $0x30] sm:$0xf]
                  %452 = vst [vmem:[%s426 + $0x30] sm:$0xf] %v451
                  %v453 = vld [vmem:[%s425 + $0x34] sm:$0xf]
                  %454 = vst [vmem:[%s426 + $0x34] sm:$0xf] %v453
                  %v455 = vld [vmem:[%s425 + $0x38] sm:$0xf]
                  %456 = vst [vmem:[%s426 + $0x38] sm:$0xf] %v455
                  %v457 = vld [vmem:[%s425 + $0x3c] sm:$0xf]
                  %458 = vst [vmem:[%s426 + $0x3c] sm:$0xf] %v457
                  %v459 = vld [vmem:[%s425 + $0x40] sm:$0xf]
                  %460 = vst [vmem:[%s426 + $0x40] sm:$0xf] %v459
                  %v461 = vld [vmem:[%s425 + $0x44] sm:$0xf]
                  %462 = vst [vmem:[%s426 + $0x44] sm:$0xf] %v461
                  %v463 = vld [vmem:[%s425 + $0x48] sm:$0xf]
                  %464 = vst [vmem:[%s426 + $0x48] sm:$0xf] %v463
                  %v465 = vld [vmem:[%s425 + $0x4c] sm:$0xf]
                  %466 = vst [vmem:[%s426 + $0x4c] sm:$0xf] %v465
                  %v467 = vld [vmem:[%s425 + $0xa0] sm:$0xf]
                  %468 = vst [vmem:[%s426 + $0x50] sm:$0xf] %v467
                  %v469 = vld [vmem:[%s425 + $0xa4] sm:$0xf]
                  %470 = vst [vmem:[%s426 + $0x54] sm:$0xf] %v469
                  %v471 = vld [vmem:[%s425 + $0xa8] sm:$0xf]
                  %472 = vst [vmem:[%s426 + $0x58] sm:$0xf] %v471
                  %v473 = vld [vmem:[%s425 + $0xac] sm:$0xf]
                  %474 = vst [vmem:[%s426 + $0x5c] sm:$0xf] %v473
                  %v475 = vld [vmem:[%s425 + $0xb0] sm:$0xf]
                  %476 = vst [vmem:[%s426 + $0x60] sm:$0xf] %v475
                  %v477 = vld [vmem:[%s425 + $0xb4] sm:$0xf]
                  %478 = vst [vmem:[%s426 + $0x64] sm:$0xf] %v477
                  %v479 = vld [vmem:[%s425 + $0xb8] sm:$0xf]
                  %480 = vst [vmem:[%s426 + $0x68] sm:$0xf] %v479
                  %v481 = vld [vmem:[%s425 + $0xbc] sm:$0xf]
                  %482 = vst [vmem:[%s426 + $0x6c] sm:$0xf] %v481
                  %v483 = vld [vmem:[%s425 + $0xc0] sm:$0xf]
                  %484 = vst [vmem:[%s426 + $0x70] sm:$0xf] %v483
                  %v485 = vld [vmem:[%s425 + $0xc4] sm:$0xf]
                  %486 = vst [vmem:[%s426 + $0x74] sm:$0xf] %v485
                  %v487 = vld [vmem:[%s425 + $0xc8] sm:$0xf]
                  %488 = vst [vmem:[%s426 + $0x78] sm:$0xf] %v487
                  %v489 = vld [vmem:[%s425 + $0xcc] sm:$0xf]
                  %490 = vst [vmem:[%s426 + $0x7c] sm:$0xf] %v489
                  %v491 = vld [vmem:[%s425 + $0xd0] sm:$0xf]
                  %492 = vst [vmem:[%s426 + $0x80] sm:$0xf] %v491
                  %v493 = vld [vmem:[%s425 + $0xd4] sm:$0xf]
                  %494 = vst [vmem:[%s426 + $0x84] sm:$0xf] %v493
                  %v495 = vld [vmem:[%s425 + $0xd8] sm:$0xf]
                  %496 = vst [vmem:[%s426 + $0x88] sm:$0xf] %v495
                  %v497 = vld [vmem:[%s425 + $0xdc] sm:$0xf]
                  %498 = vst [vmem:[%s426 + $0x8c] sm:$0xf] %v497
                  %v499 = vld [vmem:[%s425 + $0xe0] sm:$0xf]
                  %500 = vst [vmem:[%s426 + $0x90] sm:$0xf] %v499
                  %v501 = vld [vmem:[%s425 + $0xe4] sm:$0xf]
                  %502 = vst [vmem:[%s426 + $0x94] sm:$0xf] %v501
                  %v503 = vld [vmem:[%s425 + $0xe8] sm:$0xf]
                  %504 = vst [vmem:[%s426 + $0x98] sm:$0xf] %v503
                  %v505 = vld [vmem:[%s425 + $0xec] sm:$0xf]
                  %506 = vst [vmem:[%s426 + $0x9c] sm:$0xf] %v505
                $region83: #{siamese_feature_network.1} parent=70 // loop_footer
                  %s424 = sadd.s32 1, %s420
                $region84: #{siamese_feature_network.1} parent=70 // loop_footer_branch
                  %419 = sbr.rel target = $region80
                $region85: #{siamese_feature_network.1} parent=70 // loop_exit
                  _
              $region71: #{siamese_feature_network.1} parent=55 // pred_fallthru
                _
            $region56: #{siamese_feature_network.1} parent=51 // pred_fallthru
              _
            // Predicated region
            $region57: #{siamese_feature_network.1} parent=51 // pred_check
              _
            $region58: #{siamese_feature_network.1} parent=51 // pred_check_branch
              %318 = sbr.rel (0) target = $region60
            $region59: #{siamese_feature_network.1} parent=51 // pred_region
              loop: start=0, step=1, limit=1
              $region61: #{siamese_feature_network.1} parent=59 // loop_pre_header
                _
              $region62: #{siamese_feature_network.1} parent=59 // loop_header
                %s321 = sphi 0, %s325
                %p322 = scmp.ge.s32.totalorder %s321, 1
                %s326 = sphi %s312, %s312
                %s327 = sphi %s307, %s307
              $region63: #{siamese_feature_network.1} parent=59 // loop_header_branch
                %324 = sbr.rel (%p322) target = $region67
              $region64: #{siamese_feature_network.1} parent=59 // loop_body
                %v328 = vld [vmem:[%s326] sm:$0xf]
                %329 = vst [vmem:[%s327] sm:$0xf] %v328
                %v330 = vld [vmem:[%s326 + $0x4] sm:$0xf]
                %331 = vst [vmem:[%s327 + $0x4] sm:$0xf] %v330
                %v332 = vld [vmem:[%s326 + $0x8] sm:$0xf]
                %333 = vst [vmem:[%s327 + $0x8] sm:$0xf] %v332
                %v334 = vld [vmem:[%s326 + $0xc] sm:$0xf]
                %335 = vst [vmem:[%s327 + $0xc] sm:$0xf] %v334
                %v336 = vld [vmem:[%s326 + $0x10] sm:$0xf]
                %337 = vst [vmem:[%s327 + $0x10] sm:$0xf] %v336
                %v338 = vld [vmem:[%s326 + $0x14] sm:$0xf]
                %339 = vst [vmem:[%s327 + $0x14] sm:$0xf] %v338
                %v340 = vld [vmem:[%s326 + $0x18] sm:$0xf]
                %341 = vst [vmem:[%s327 + $0x18] sm:$0xf] %v340
                %v342 = vld [vmem:[%s326 + $0x1c] sm:$0xf]
                %343 = vst [vmem:[%s327 + $0x1c] sm:$0xf] %v342
                %v344 = vld [vmem:[%s326 + $0x20] sm:$0xf]
                %345 = vst [vmem:[%s327 + $0x20] sm:$0xf] %v344
                %v346 = vld [vmem:[%s326 + $0x24] sm:$0xf]
                %347 = vst [vmem:[%s327 + $0x24] sm:$0xf] %v346
                %v348 = vld [vmem:[%s326 + $0x28] sm:$0xf]
                %349 = vst [vmem:[%s327 + $0x28] sm:$0xf] %v348
                %v350 = vld [vmem:[%s326 + $0x2c] sm:$0xf]
                %351 = vst [vmem:[%s327 + $0x2c] sm:$0xf] %v350
                %v352 = vld [vmem:[%s326 + $0x30] sm:$0xf]
                %353 = vst [vmem:[%s327 + $0x30] sm:$0xf] %v352
                %v354 = vld [vmem:[%s326 + $0x34] sm:$0xf]
                %355 = vst [vmem:[%s327 + $0x34] sm:$0xf] %v354
                %v356 = vld [vmem:[%s326 + $0x38] sm:$0xf]
                %357 = vst [vmem:[%s327 + $0x38] sm:$0xf] %v356
                %v358 = vld [vmem:[%s326 + $0x3c] sm:$0xf]
                %359 = vst [vmem:[%s327 + $0x3c] sm:$0xf] %v358
                %v360 = vld [vmem:[%s326 + $0x40] sm:$0xf]
                %361 = vst [vmem:[%s327 + $0x40] sm:$0xf] %v360
                %v362 = vld [vmem:[%s326 + $0x44] sm:$0xf]
                %363 = vst [vmem:[%s327 + $0x44] sm:$0xf] %v362
                %v364 = vld [vmem:[%s326 + $0x48] sm:$0xf]
                %365 = vst [vmem:[%s327 + $0x48] sm:$0xf] %v364
                %v366 = vld [vmem:[%s326 + $0x4c] sm:$0xf]
                %367 = vst [vmem:[%s327 + $0x4c] sm:$0xf] %v366
                %v368 = vld [vmem:[%s326 + $0xa0] sm:$0xf]
                %369 = vst [vmem:[%s327 + $0x50] sm:$0xf] %v368
                %v370 = vld [vmem:[%s326 + $0xa4] sm:$0xf]
                %371 = vst [vmem:[%s327 + $0x54] sm:$0xf] %v370
                %v372 = vld [vmem:[%s326 + $0xa8] sm:$0xf]
                %373 = vst [vmem:[%s327 + $0x58] sm:$0xf] %v372
                %v374 = vld [vmem:[%s326 + $0xac] sm:$0xf]
                %375 = vst [vmem:[%s327 + $0x5c] sm:$0xf] %v374
                %v376 = vld [vmem:[%s326 + $0xb0] sm:$0xf]
                %377 = vst [vmem:[%s327 + $0x60] sm:$0xf] %v376
                %v378 = vld [vmem:[%s326 + $0xb4] sm:$0xf]
                %379 = vst [vmem:[%s327 + $0x64] sm:$0xf] %v378
                %v380 = vld [vmem:[%s326 + $0xb8] sm:$0xf]
                %381 = vst [vmem:[%s327 + $0x68] sm:$0xf] %v380
                %v382 = vld [vmem:[%s326 + $0xbc] sm:$0xf]
                %383 = vst [vmem:[%s327 + $0x6c] sm:$0xf] %v382
                %v384 = vld [vmem:[%s326 + $0xc0] sm:$0xf]
                %385 = vst [vmem:[%s327 + $0x70] sm:$0xf] %v384
                %v386 = vld [vmem:[%s326 + $0xc4] sm:$0xf]
                %387 = vst [vmem:[%s327 + $0x74] sm:$0xf] %v386
                %v388 = vld [vmem:[%s326 + $0xc8] sm:$0xf]
                %389 = vst [vmem:[%s327 + $0x78] sm:$0xf] %v388
                %v390 = vld [vmem:[%s326 + $0xcc] sm:$0xf]
                %391 = vst [vmem:[%s327 + $0x7c] sm:$0xf] %v390
                %v392 = vld [vmem:[%s326 + $0xd0] sm:$0xf]
                %393 = vst [vmem:[%s327 + $0x80] sm:$0xf] %v392
                %v394 = vld [vmem:[%s326 + $0xd4] sm:$0xf]
                %395 = vst [vmem:[%s327 + $0x84] sm:$0xf] %v394
                %v396 = vld [vmem:[%s326 + $0xd8] sm:$0xf]
                %397 = vst [vmem:[%s327 + $0x88] sm:$0xf] %v396
                %v398 = vld [vmem:[%s326 + $0xdc] sm:$0xf]
                %399 = vst [vmem:[%s327 + $0x8c] sm:$0xf] %v398
                %v400 = vld [vmem:[%s326 + $0xe0] sm:$0xf]
                %401 = vst [vmem:[%s327 + $0x90] sm:$0xf] %v400
                %v402 = vld [vmem:[%s326 + $0xe4] sm:$0xf]
                %403 = vst [vmem:[%s327 + $0x94] sm:$0xf] %v402
                %v404 = vld [vmem:[%s326 + $0xe8] sm:$0xf]
                %405 = vst [vmem:[%s327 + $0x98] sm:$0xf] %v404
                %v406 = vld [vmem:[%s326 + $0xec] sm:$0xf]
                %407 = vst [vmem:[%s327 + $0x9c] sm:$0xf] %v406
              $region65: #{siamese_feature_network.1} parent=59 // loop_footer
                %s325 = sadd.s32 1, %s321
              $region66: #{siamese_feature_network.1} parent=59 // loop_footer_branch
                %320 = sbr.rel target = $region62
              $region67: #{siamese_feature_network.1} parent=59 // loop_exit
                _
            $region60: #{siamese_feature_network.1} parent=51 // pred_fallthru
              _
          $region52: #{siamese_feature_network.1} parent=47 // pred_fallthru
            _
          %507 = vnop
        $region48: #{siamese_feature_network.1} parent=43 // pred_fallthru
          _
      $region44: #{siamese_feature_network.1} parent=5 // pred_fallthru
        _
      %p508 = scmp.le.s32.totalorder 1, %s22
      %p509 = scmp.lt.s32.totalorder %s22, 5
      %p510 = pnand %p508, %p509
      %p511 = pneg %p510
      // Predicated region
      $region86: #{siamese_feature_network.1} parent=5 // pred_check
        _
      $region87: #{siamese_feature_network.1} parent=5 // pred_check_branch
        %513 = sbr.rel (%p510) target = $region89
      $region88: #{siamese_feature_network.1} parent=5 // pred_region
        %s514 = ssub.s32 %s22, 1
        %s515 = sand.u32 %s49, 1
        %s516 = sand.u32 %s49, 1
        %s517 = smul.addr %s516, 160
        %s518 = scalar_lea.vmem [#allocation4], %s517
        // Predicated region
        $region90: #{siamese_feature_network.1} parent=88 // pred_check
          %p519 = pneg %p62
        $region91: #{siamese_feature_network.1} parent=88 // pred_check_branch
          %521 = sbr.rel (%p519) target = $region93
        $region92: #{siamese_feature_network.1} parent=88 // pred_region
          _
        $region93: #{siamese_feature_network.1} parent=88 // pred_fallthru
          _
        %s522 = sand.u32 %s49, 1
        %s523 = sand.u32 %s49, 1
        %s524 = smul.addr %s523, 160
        %s525 = scalar_lea.vmem [#allocation4], %s524
        %p526 = pneg %p62
        %p527 = pneg %p59
        %p528 = pneg %p83
        %p529 = pneg %p80
        %p530 = pneg %p104
        %p531 = pneg %p101
        %p532 = pneg %p125
        %p533 = pneg %p122
        %p534 = pneg %p146
        %p535 = pneg %p143
        %p536 = pneg %p167
        %p537 = pneg %p164
        %p538 = pneg %p188
        %p539 = pneg %p185
        %p540 = pneg %p209
        %p541 = pneg %p206
        %p542 = pneg %p235
        %p543 = pneg %p232
        %s544 = sand.u32 %s222, 1
        %s545 = scalar_lea.sflag [#allocation6], %s544
        %s546 = sand.u32 %s222, 1
        %s547 = scalar_lea.vmem [#allocation5], %s546
        %p548 = pneg %p261
        %p549 = pneg %p258
        %s550 = sand.u32 %s248, 1
        %s551 = scalar_lea.sflag [#allocation8], %s550
        %s552 = sand.u32 %s248, 1
        %s553 = scalar_lea.vmem [#allocation7], %s552
        %p555 = scmp.eq.s32.totalorder %s32, 0
        // Predicated region
        $region94: #{siamese_feature_network.1} parent=88 // pred_check
          %p556 = pneg %p555
        $region95: #{siamese_feature_network.1} parent=88 // pred_check_branch
          %558 = sbr.rel (%p556) target = $region97
        $region96: #{siamese_feature_network.1} parent=88 // pred_region
          %559 = vst [vmem:[#allocation2] sm:$0x3] 0.0
        $region97: #{siamese_feature_network.1} parent=88 // pred_fallthru
          _
        %v560 = vld [vmem:[%s518] sm:$0xf]
        %v561 = vld [vmem:[%s518 + $0x4] sm:$0xf]
        %v562 = vld [vmem:[%s518 + $0x8] sm:$0xf]
        %v563 = vld [vmem:[%s518 + $0xc] sm:$0xf]
        %v564 = vld [vmem:[%s518 + $0x10] sm:$0xf]
        %v565 = vld [vmem:[%s518 + $0x14] sm:$0xf]
        %v566 = vld [vmem:[%s518 + $0x18] sm:$0xf]
        %v567 = vld [vmem:[%s518 + $0x1c] sm:$0xf]
        %v568 = vld [vmem:[%s518 + $0x20] sm:$0xf]
        %v569 = vld [vmem:[%s518 + $0x24] sm:$0xf]
        %v570 = vld [vmem:[%s518 + $0x28] sm:$0xf]
        %v571 = vld [vmem:[%s518 + $0x2c] sm:$0xf]
        %v572 = vld [vmem:[%s518 + $0x30] sm:$0xf]
        %v573 = vld [vmem:[%s518 + $0x34] sm:$0xf]
        %v574 = vld [vmem:[%s518 + $0x38] sm:$0xf]
        %v575 = vld [vmem:[%s518 + $0x3c] sm:$0xf]
        %v592 = vunpack.c.l.b16 %v560
        %v593 = vunpack.c.l.b16 %v561
        %v594 = vunpack.c.l.b16 %v562
        %v595 = vunpack.c.l.b16 %v563
        %v596 = vunpack.c.l.b16 %v564
        %v597 = vunpack.c.l.b16 %v565
        %v598 = vunpack.c.l.b16 %v566
        %v599 = vunpack.c.l.b16 %v567
        %v600 = vunpack.c.l.b16 %v568
        %v601 = vunpack.c.l.b16 %v569
        %v602 = vunpack.c.l.b16 %v570
        %v603 = vunpack.c.l.b16 %v571
        %v604 = vunpack.c.l.b16 %v572
        %v605 = vunpack.c.l.b16 %v573
        %v606 = vunpack.c.l.b16 %v574
        %v607 = vunpack.c.l.b16 %v575
        %v608 = vpack.c.b16 %v593, %v592
        %v609 = vpack.c.b16 %v595, %v594
        %v610 = vpack.c.b16 %v597, %v596
        %v611 = vpack.c.b16 %v599, %v598
        %v612 = vpack.c.b16 %v601, %v600
        %v613 = vpack.c.b16 %v603, %v602
        %v614 = vpack.c.b16 %v605, %v604
        %v615 = vpack.c.b16 %v607, %v606
        %vm624 = vcmask 130048
        %625 = vst.msk [vmem:[#allocation3] sm:$0xff] %vm624, %v608
        %626 = vst.msk [vmem:[#allocation3 + $0x8] sm:$0xff] %vm624, %v609
        %627 = vst.msk [vmem:[#allocation3 + $0x10] sm:$0xff] %vm624, %v610
        %628 = vst.msk [vmem:[#allocation3 + $0x18] sm:$0xff] %vm624, %v611
        %629 = vst.msk [vmem:[#allocation3 + $0x20] sm:$0xff] %vm624, %v612
        %630 = vst.msk [vmem:[#allocation3 + $0x28] sm:$0xff] %vm624, %v613
        %631 = vst.msk [vmem:[#allocation3 + $0x30] sm:$0xff] %vm624, %v614
        %632 = vst.msk [vmem:[#allocation3 + $0x38] sm:$0xff] %vm624, %v615
        %v633 = vld [vmem:[%s518 + $0x8] sm:$0xf]
        %v634 = vld [vmem:[%s518 + $0xc] sm:$0xf]
        %v635 = vld [vmem:[%s518 + $0x10] sm:$0xf]
        %v636 = vld [vmem:[%s518 + $0x14] sm:$0xf]
        %v637 = vld [vmem:[%s518 + $0x18] sm:$0xf]
        %v638 = vld [vmem:[%s518 + $0x1c] sm:$0xf]
        %v639 = vld [vmem:[%s518 + $0x20] sm:$0xf]
        %v640 = vld [vmem:[%s518 + $0x24] sm:$0xf]
        %v641 = vld [vmem:[%s518 + $0x28] sm:$0xf]
        %v642 = vld [vmem:[%s518 + $0x2c] sm:$0xf]
        %v643 = vld [vmem:[%s518 + $0x30] sm:$0xf]
        %v644 = vld [vmem:[%s518 + $0x34] sm:$0xf]
        %v645 = vld [vmem:[%s518 + $0x38] sm:$0xf]
        %v646 = vld [vmem:[%s518 + $0x3c] sm:$0xf]
        %v647 = vld [vmem:[%s518 + $0x40] sm:$0xf]
        %v648 = vld [vmem:[%s518 + $0x44] sm:$0xf]
        %v665 = vunpack.c.l.b16 %v633
        %v666 = vunpack.c.l.b16 %v634
        %v667 = vunpack.c.l.b16 %v635
        %v668 = vunpack.c.l.b16 %v636
        %v669 = vunpack.c.l.b16 %v637
        %v670 = vunpack.c.l.b16 %v638
        %v671 = vunpack.c.l.b16 %v639
        %v672 = vunpack.c.l.b16 %v640
        %v673 = vunpack.c.l.b16 %v641
        %v674 = vunpack.c.l.b16 %v642
        %v675 = vunpack.c.l.b16 %v643
        %v676 = vunpack.c.l.b16 %v644
        %v677 = vunpack.c.l.b16 %v645
        %v678 = vunpack.c.l.b16 %v646
        %v679 = vunpack.c.l.b16 %v647
        %v680 = vunpack.c.l.b16 %v648
        %v681 = vpack.c.b16 %v666, %v665
        %v682 = vpack.c.b16 %v668, %v667
        %v683 = vpack.c.b16 %v670, %v669
        %v684 = vpack.c.b16 %v672, %v671
        %v685 = vpack.c.b16 %v674, %v673
        %v686 = vpack.c.b16 %v676, %v675
        %v687 = vpack.c.b16 %v678, %v677
        %v688 = vpack.c.b16 %v680, %v679
        %689 = vrot.lane.b32.xlu0 %v681, 16
        %v690 = vpop.permute.xlu0 %689
        %691 = vrot.lane.b32.xlu0 %v682, 16
        %v692 = vpop.permute.xlu0 %691
        %693 = vrot.lane.b32.xlu0 %v683, 16
        %v694 = vpop.permute.xlu0 %693
        %695 = vrot.lane.b32.xlu0 %v684, 16
        %v696 = vpop.permute.xlu0 %695
        %697 = vrot.lane.b32.xlu0 %v685, 16
        %v698 = vpop.permute.xlu0 %697
        %699 = vrot.lane.b32.xlu0 %v686, 16
        %v700 = vpop.permute.xlu0 %699
        %701 = vrot.lane.b32.xlu0 %v687, 16
        %v702 = vpop.permute.xlu0 %701
        %703 = vrot.lane.b32.xlu0 %v688, 16
        %v704 = vpop.permute.xlu0 %703
        %vm713 = vcmask 261248
        %714 = vst.msk [vmem:[#allocation3] sm:$0xff] %vm713, %v690
        %715 = vst.msk [vmem:[#allocation3 + $0x8] sm:$0xff] %vm713, %v692
        %716 = vst.msk [vmem:[#allocation3 + $0x10] sm:$0xff] %vm713, %v694
        %717 = vst.msk [vmem:[#allocation3 + $0x18] sm:$0xff] %vm713, %v696
        %718 = vst.msk [vmem:[#allocation3 + $0x20] sm:$0xff] %vm713, %v698
        %719 = vst.msk [vmem:[#allocation3 + $0x28] sm:$0xff] %vm713, %v700
        %720 = vst.msk [vmem:[#allocation3 + $0x30] sm:$0xff] %vm713, %v702
        %721 = vst.msk [vmem:[#allocation3 + $0x38] sm:$0xff] %vm713, %v704
        %v722 = vld [vmem:[%s518 + $0x10] sm:$0xf]
        %v723 = vld [vmem:[%s518 + $0x14] sm:$0xf]
        %v724 = vld [vmem:[%s518 + $0x18] sm:$0xf]
        %v725 = vld [vmem:[%s518 + $0x1c] sm:$0xf]
        %v726 = vld [vmem:[%s518 + $0x20] sm:$0xf]
        %v727 = vld [vmem:[%s518 + $0x24] sm:$0xf]
        %v728 = vld [vmem:[%s518 + $0x28] sm:$0xf]
        %v729 = vld [vmem:[%s518 + $0x2c] sm:$0xf]
        %v730 = vld [vmem:[%s518 + $0x30] sm:$0xf]
        %v731 = vld [vmem:[%s518 + $0x34] sm:$0xf]
        %v732 = vld [vmem:[%s518 + $0x38] sm:$0xf]
        %v733 = vld [vmem:[%s518 + $0x3c] sm:$0xf]
        %v734 = vld [vmem:[%s518 + $0x40] sm:$0xf]
        %v735 = vld [vmem:[%s518 + $0x44] sm:$0xf]
        %v736 = vld [vmem:[%s518 + $0x48] sm:$0xf]
        %v737 = vld [vmem:[%s518 + $0x4c] sm:$0xf]
        %v754 = vunpack.c.l.b16 %v722
        %v755 = vunpack.c.l.b16 %v723
        %v756 = vunpack.c.l.b16 %v724
        %v757 = vunpack.c.l.b16 %v725
        %v758 = vunpack.c.l.b16 %v726
        %v759 = vunpack.c.l.b16 %v727
        %v760 = vunpack.c.l.b16 %v728
        %v761 = vunpack.c.l.b16 %v729
        %v762 = vunpack.c.l.b16 %v730
        %v763 = vunpack.c.l.b16 %v731
        %v764 = vunpack.c.l.b16 %v732
        %v765 = vunpack.c.l.b16 %v733
        %v766 = vunpack.c.l.b16 %v734
        %v767 = vunpack.c.l.b16 %v735
        %v768 = vunpack.c.l.b16 %v736
        %v769 = vunpack.c.l.b16 %v737
        %v770 = vpack.c.b16 %v755, %v754
        %v771 = vpack.c.b16 %v757, %v756
        %v772 = vpack.c.b16 %v759, %v758
        %v773 = vpack.c.b16 %v761, %v760
        %v774 = vpack.c.b16 %v763, %v762
        %v775 = vpack.c.b16 %v765, %v764
        %v776 = vpack.c.b16 %v767, %v766
        %v777 = vpack.c.b16 %v769, %v768
        %778 = vrot.lane.b32.xlu0 %v770, 32
        %v779 = vpop.permute.xlu0 %778
        %780 = vrot.lane.b32.xlu0 %v771, 32
        %v781 = vpop.permute.xlu0 %780
        %782 = vrot.lane.b32.xlu0 %v772, 32
        %v783 = vpop.permute.xlu0 %782
        %784 = vrot.lane.b32.xlu0 %v773, 32
        %v785 = vpop.permute.xlu0 %784
        %786 = vrot.lane.b32.xlu0 %v774, 32
        %v787 = vpop.permute.xlu0 %786
        %788 = vrot.lane.b32.xlu0 %v775, 32
        %v789 = vpop.permute.xlu0 %788
        %790 = vrot.lane.b32.xlu0 %v776, 32
        %v791 = vpop.permute.xlu0 %790
        %792 = vrot.lane.b32.xlu0 %v777, 32
        %v793 = vpop.permute.xlu0 %792
        %vm802 = vcmask 392448
        %803 = vst.msk [vmem:[#allocation3] sm:$0xff] %vm802, %v779
        %804 = vst.msk [vmem:[#allocation3 + $0x8] sm:$0xff] %vm802, %v781
        %805 = vst.msk [vmem:[#allocation3 + $0x10] sm:$0xff] %vm802, %v783
        %806 = vst.msk [vmem:[#allocation3 + $0x18] sm:$0xff] %vm802, %v785
        %807 = vst.msk [vmem:[#allocation3 + $0x20] sm:$0xff] %vm802, %v787
        %808 = vst.msk [vmem:[#allocation3 + $0x28] sm:$0xff] %vm802, %v789
        %809 = vst.msk [vmem:[#allocation3 + $0x30] sm:$0xff] %vm802, %v791
        %810 = vst.msk [vmem:[#allocation3 + $0x38] sm:$0xff] %vm802, %v793
        %s811 = scalar_lea.vmem %s518, 80 [#allocation4]
        %v812 = vld [vmem:[%s811] sm:$0xf]
        %v813 = vld [vmem:[%s811 + $0x4] sm:$0xf]
        %v814 = vld [vmem:[%s811 + $0x8] sm:$0xf]
        %v815 = vld [vmem:[%s811 + $0xc] sm:$0xf]
        %v816 = vld [vmem:[%s811 + $0x10] sm:$0xf]
        %v817 = vld [vmem:[%s811 + $0x14] sm:$0xf]
        %v818 = vld [vmem:[%s811 + $0x18] sm:$0xf]
        %v819 = vld [vmem:[%s811 + $0x1c] sm:$0xf]
        %v820 = vld [vmem:[%s811 + $0x20] sm:$0xf]
        %v821 = vld [vmem:[%s811 + $0x24] sm:$0xf]
        %v822 = vld [vmem:[%s811 + $0x28] sm:$0xf]
        %v823 = vld [vmem:[%s811 + $0x2c] sm:$0xf]
        %v824 = vld [vmem:[%s811 + $0x30] sm:$0xf]
        %v825 = vld [vmem:[%s811 + $0x34] sm:$0xf]
        %v826 = vld [vmem:[%s811 + $0x38] sm:$0xf]
        %v827 = vld [vmem:[%s811 + $0x3c] sm:$0xf]
        %v844 = vunpack.c.l.b16 %v812
        %v845 = vunpack.c.l.b16 %v813
        %v846 = vunpack.c.l.b16 %v814
        %v847 = vunpack.c.l.b16 %v815
        %v848 = vunpack.c.l.b16 %v816
        %v849 = vunpack.c.l.b16 %v817
        %v850 = vunpack.c.l.b16 %v818
        %v851 = vunpack.c.l.b16 %v819
        %v852 = vunpack.c.l.b16 %v820
        %v853 = vunpack.c.l.b16 %v821
        %v854 = vunpack.c.l.b16 %v822
        %v855 = vunpack.c.l.b16 %v823
        %v856 = vunpack.c.l.b16 %v824
        %v857 = vunpack.c.l.b16 %v825
        %v858 = vunpack.c.l.b16 %v826
        %v859 = vunpack.c.l.b16 %v827
        %v860 = vpack.c.b16 %v845, %v844
        %v861 = vpack.c.b16 %v847, %v846
        %v862 = vpack.c.b16 %v849, %v848
        %v863 = vpack.c.b16 %v851, %v850
        %v864 = vpack.c.b16 %v853, %v852
        %v865 = vpack.c.b16 %v855, %v854
        %v866 = vpack.c.b16 %v857, %v856
        %v867 = vpack.c.b16 %v859, %v858
        %876 = vst.msk [vmem:[#allocation3 + $0x40] sm:$0xff] %vm624, %v860
        %877 = vst.msk [vmem:[#allocation3 + $0x48] sm:$0xff] %vm624, %v861
        %878 = vst.msk [vmem:[#allocation3 + $0x50] sm:$0xff] %vm624, %v862
        %879 = vst.msk [vmem:[#allocation3 + $0x58] sm:$0xff] %vm624, %v863
        %880 = vst.msk [vmem:[#allocation3 + $0x60] sm:$0xff] %vm624, %v864
        %881 = vst.msk [vmem:[#allocation3 + $0x68] sm:$0xff] %vm624, %v865
        %882 = vst.msk [vmem:[#allocation3 + $0x70] sm:$0xff] %vm624, %v866
        %883 = vst.msk [vmem:[#allocation3 + $0x78] sm:$0xff] %vm624, %v867
        %v884 = vld [vmem:[%s811 + $0x8] sm:$0xf]
        %v885 = vld [vmem:[%s811 + $0xc] sm:$0xf]
        %v886 = vld [vmem:[%s811 + $0x10] sm:$0xf]
        %v887 = vld [vmem:[%s811 + $0x14] sm:$0xf]
        %v888 = vld [vmem:[%s811 + $0x18] sm:$0xf]
        %v889 = vld [vmem:[%s811 + $0x1c] sm:$0xf]
        %v890 = vld [vmem:[%s811 + $0x20] sm:$0xf]
        %v891 = vld [vmem:[%s811 + $0x24] sm:$0xf]
        %v892 = vld [vmem:[%s811 + $0x28] sm:$0xf]
        %v893 = vld [vmem:[%s811 + $0x2c] sm:$0xf]
        %v894 = vld [vmem:[%s811 + $0x30] sm:$0xf]
        %v895 = vld [vmem:[%s811 + $0x34] sm:$0xf]
        %v896 = vld [vmem:[%s811 + $0x38] sm:$0xf]
        %v897 = vld [vmem:[%s811 + $0x3c] sm:$0xf]
        %v898 = vld [vmem:[%s811 + $0x40] sm:$0xf]
        %v899 = vld [vmem:[%s811 + $0x44] sm:$0xf]
        %v916 = vunpack.c.l.b16 %v884
        %v917 = vunpack.c.l.b16 %v885
        %v918 = vunpack.c.l.b16 %v886
        %v919 = vunpack.c.l.b16 %v887
        %v920 = vunpack.c.l.b16 %v888
        %v921 = vunpack.c.l.b16 %v889
        %v922 = vunpack.c.l.b16 %v890
        %v923 = vunpack.c.l.b16 %v891
        %v924 = vunpack.c.l.b16 %v892
        %v925 = vunpack.c.l.b16 %v893
        %v926 = vunpack.c.l.b16 %v894
        %v927 = vunpack.c.l.b16 %v895
        %v928 = vunpack.c.l.b16 %v896
        %v929 = vunpack.c.l.b16 %v897
        %v930 = vunpack.c.l.b16 %v898
        %v931 = vunpack.c.l.b16 %v899
        %v932 = vpack.c.b16 %v917, %v916
        %v933 = vpack.c.b16 %v919, %v918
        %v934 = vpack.c.b16 %v921, %v920
        %v935 = vpack.c.b16 %v923, %v922
        %v936 = vpack.c.b16 %v925, %v924
        %v937 = vpack.c.b16 %v927, %v926
        %v938 = vpack.c.b16 %v929, %v928
        %v939 = vpack.c.b16 %v931, %v930
        %940 = vrot.lane.b32.xlu0 %v932, 16
        %v941 = vpop.permute.xlu0 %940
        %942 = vrot.lane.b32.xlu0 %v933, 16
        %v943 = vpop.permute.xlu0 %942
        %944 = vrot.lane.b32.xlu0 %v934, 16
        %v945 = vpop.permute.xlu0 %944
        %946 = vrot.lane.b32.xlu0 %v935, 16
        %v947 = vpop.permute.xlu0 %946
        %948 = vrot.lane.b32.xlu0 %v936, 16
        %v949 = vpop.permute.xlu0 %948
        %950 = vrot.lane.b32.xlu0 %v937, 16
        %v951 = vpop.permute.xlu0 %950
        %952 = vrot.lane.b32.xlu0 %v938, 16
        %v953 = vpop.permute.xlu0 %952
        %954 = vrot.lane.b32.xlu0 %v939, 16
        %v955 = vpop.permute.xlu0 %954
        %964 = vst.msk [vmem:[#allocation3 + $0x40] sm:$0xff] %vm713, %v941
        %965 = vst.msk [vmem:[#allocation3 + $0x48] sm:$0xff] %vm713, %v943
        %966 = vst.msk [vmem:[#allocation3 + $0x50] sm:$0xff] %vm713, %v945
        %967 = vst.msk [vmem:[#allocation3 + $0x58] sm:$0xff] %vm713, %v947
        %968 = vst.msk [vmem:[#allocation3 + $0x60] sm:$0xff] %vm713, %v949
        %969 = vst.msk [vmem:[#allocation3 + $0x68] sm:$0xff] %vm713, %v951
        %970 = vst.msk [vmem:[#allocation3 + $0x70] sm:$0xff] %vm713, %v953
        %971 = vst.msk [vmem:[#allocation3 + $0x78] sm:$0xff] %vm713, %v955
        %v972 = vld [vmem:[%s811 + $0x10] sm:$0xf]
        %v973 = vld [vmem:[%s811 + $0x14] sm:$0xf]
        %v974 = vld [vmem:[%s811 + $0x18] sm:$0xf]
        %v975 = vld [vmem:[%s811 + $0x1c] sm:$0xf]
        %v976 = vld [vmem:[%s811 + $0x20] sm:$0xf]
        %v977 = vld [vmem:[%s811 + $0x24] sm:$0xf]
        %v978 = vld [vmem:[%s811 + $0x28] sm:$0xf]
        %v979 = vld [vmem:[%s811 + $0x2c] sm:$0xf]
        %v980 = vld [vmem:[%s811 + $0x30] sm:$0xf]
        %v981 = vld [vmem:[%s811 + $0x34] sm:$0xf]
        %v982 = vld [vmem:[%s811 + $0x38] sm:$0xf]
        %v983 = vld [vmem:[%s811 + $0x3c] sm:$0xf]
        %v984 = vld [vmem:[%s811 + $0x40] sm:$0xf]
        %v985 = vld [vmem:[%s811 + $0x44] sm:$0xf]
        %v986 = vld [vmem:[%s811 + $0x48] sm:$0xf]
        %v987 = vld [vmem:[%s811 + $0x4c] sm:$0xf]
        %v1004 = vunpack.c.l.b16 %v972
        %v1005 = vunpack.c.l.b16 %v973
        %v1006 = vunpack.c.l.b16 %v974
        %v1007 = vunpack.c.l.b16 %v975
        %v1008 = vunpack.c.l.b16 %v976
        %v1009 = vunpack.c.l.b16 %v977
        %v1010 = vunpack.c.l.b16 %v978
        %v1011 = vunpack.c.l.b16 %v979
        %v1012 = vunpack.c.l.b16 %v980
        %v1013 = vunpack.c.l.b16 %v981
        %v1014 = vunpack.c.l.b16 %v982
        %v1015 = vunpack.c.l.b16 %v983
        %v1016 = vunpack.c.l.b16 %v984
        %v1017 = vunpack.c.l.b16 %v985
        %v1018 = vunpack.c.l.b16 %v986
        %v1019 = vunpack.c.l.b16 %v987
        %v1020 = vpack.c.b16 %v1005, %v1004
        %v1021 = vpack.c.b16 %v1007, %v1006
        %v1022 = vpack.c.b16 %v1009, %v1008
        %v1023 = vpack.c.b16 %v1011, %v1010
        %v1024 = vpack.c.b16 %v1013, %v1012
        %v1025 = vpack.c.b16 %v1015, %v1014
        %v1026 = vpack.c.b16 %v1017, %v1016
        %v1027 = vpack.c.b16 %v1019, %v1018
        %1028 = vrot.lane.b32.xlu0 %v1020, 32
        %v1029 = vpop.permute.xlu0 %1028
        %1030 = vrot.lane.b32.xlu0 %v1021, 32
        %v1031 = vpop.permute.xlu0 %1030
        %1032 = vrot.lane.b32.xlu0 %v1022, 32
        %v1033 = vpop.permute.xlu0 %1032
        %1034 = vrot.lane.b32.xlu0 %v1023, 32
        %v1035 = vpop.permute.xlu0 %1034
        %1036 = vrot.lane.b32.xlu0 %v1024, 32
        %v1037 = vpop.permute.xlu0 %1036
        %1038 = vrot.lane.b32.xlu0 %v1025, 32
        %v1039 = vpop.permute.xlu0 %1038
        %1040 = vrot.lane.b32.xlu0 %v1026, 32
        %v1041 = vpop.permute.xlu0 %1040
        %1042 = vrot.lane.b32.xlu0 %v1027, 32
        %v1043 = vpop.permute.xlu0 %1042
        %1052 = vst.msk [vmem:[#allocation3 + $0x40] sm:$0xff] %vm802, %v1029
        %1053 = vst.msk [vmem:[#allocation3 + $0x48] sm:$0xff] %vm802, %v1031
        %1054 = vst.msk [vmem:[#allocation3 + $0x50] sm:$0xff] %vm802, %v1033
        %1055 = vst.msk [vmem:[#allocation3 + $0x58] sm:$0xff] %vm802, %v1035
        %1056 = vst.msk [vmem:[#allocation3 + $0x60] sm:$0xff] %vm802, %v1037
        %1057 = vst.msk [vmem:[#allocation3 + $0x68] sm:$0xff] %vm802, %v1039
        %1058 = vst.msk [vmem:[#allocation3 + $0x70] sm:$0xff] %vm802, %v1041
        %1059 = vst.msk [vmem:[#allocation3 + $0x78] sm:$0xff] %vm802, %v1043
        %v1060 = vld [vmem:[#allocation3] sm:$0xff]
        %v1061 = vld [vmem:[#allocation3 + $0x8] sm:$0xff]
        %v1062 = vld [vmem:[#allocation3 + $0x10] sm:$0xff]
        %v1063 = vld [vmem:[#allocation3 + $0x18] sm:$0xff]
        %v1064 = vld [vmem:[#allocation3 + $0x20] sm:$0xff]
        %v1065 = vld [vmem:[#allocation3 + $0x28] sm:$0xff]
        %v1066 = vld [vmem:[#allocation3 + $0x30] sm:$0xff]
        %v1067 = vld [vmem:[#allocation3 + $0x38] sm:$0xff]
        %v1068 = vld [vmem:[#allocation3 + $0x40] sm:$0xff]
        %v1069 = vld [vmem:[#allocation3 + $0x48] sm:$0xff]
        %v1070 = vld [vmem:[#allocation3 + $0x50] sm:$0xff]
        %v1071 = vld [vmem:[#allocation3 + $0x58] sm:$0xff]
        %v1072 = vld [vmem:[#allocation3 + $0x60] sm:$0xff]
        %v1073 = vld [vmem:[#allocation3 + $0x68] sm:$0xff]
        %v1074 = vld [vmem:[#allocation3 + $0x70] sm:$0xff]
        %v1075 = vld [vmem:[#allocation3 + $0x78] sm:$0xff]
        %v1076 = vld [vmem:[%s1] sm:$0xf]
        %v1077 = vld [vmem:[%s1 + $0x4] sm:$0xf]
        %v1078 = vld [vmem:[%s1 + $0x8] sm:$0xf]
        %v1079 = vld [vmem:[%s1 + $0xc] sm:$0xf]
        %v1080 = vld [vmem:[%s1 + $0x10] sm:$0xf]
        %v1081 = vld [vmem:[%s1 + $0x14] sm:$0xf]
        %v1082 = vld [vmem:[%s2] sm:$0x1]
        %v1084 = vlaneseq
        %v1085 = vshrl.u32 %v1084, 7
        %v1086 = vsub.s32 0, %v1085
        %v1087 = vrot.slane %v1082, %v1086
        %v1095 = vunpack.c.l.b16 %v1076
        %v1096 = vunpack.c.l.b16 %v1077
        %v1097 = vunpack.c.l.b16 %v1078
        %v1098 = vunpack.c.l.b16 %v1079
        %v1099 = vunpack.c.l.b16 %v1080
        %v1100 = vunpack.c.l.b16 %v1081
        %v1101 = vpack.c.b16 %v1096, %v1095
        %v1102 = vpack.c.b16 %v1098, %v1097
        %v1103 = vpack.c.b16 %v1100, %v1099
        %vm1107 = vcmask 392192
        %v1109 = vsel %vm1107, %v1060, 0
        %v1112 = vsel %vm1107, %v1061, 0
        %v1115 = vsel %vm1107, %v1062, 0
        %v1118 = vsel %vm1107, %v1063, 0
        %v1121 = vsel %vm1107, %v1064, 0
        %v1124 = vsel %vm1107, %v1065, 0
        %v1127 = vsel %vm1107, %v1066, 0
        %v1130 = vsel %vm1107, %v1067, 0
        %v1133 = vsel %vm1107, %v1068, 0
        %v1136 = vsel %vm1107, %v1069, 0
        %v1139 = vsel %vm1107, %v1070, 0
        %v1142 = vsel %vm1107, %v1071, 0
        %v1145 = vsel %vm1107, %v1072, 0
        %v1148 = vsel %vm1107, %v1073, 0
        %v1151 = vsel %vm1107, %v1074, 0
        %v1154 = vsel %vm1107, %v1075, 0
        %1156 = vmatprep.subr.bf16.mxu0 0
        %1157 = vmatpush1.bf16.msra.mxu0 %v1101
        %1158 = vmatprep.subr.bf16.mxu0 0
        %1159 = vmatpush1.bf16.msra.mxu0 %v1102
        %1160 = vmatprep.subr.bf16.mxu0 0
        %1161 = vmatpush1.bf16.msra.mxu0 %v1103
        %1162 = vmatprep.subr.bf16.mxu0 0
        %1163 = vmatpush1.bf16.msra.mxu0 0
        %1164 = vmatprep.subr.bf16.mxu0 0
        %1165 = vmatpush1.bf16.msra.mxu0 0
        %1166 = vmatprep.subr.bf16.mxu0 0
        %1167 = vmatpush1.bf16.msra.mxu0 0
        %1168 = vmatprep.subr.bf16.mxu0 0
        %1169 = vmatpush1.bf16.msra.mxu0 0
        %1170 = vmatprep.subr.bf16.mxu0 0
        %1171 = vmatpush1.bf16.msra.mxu0 0
        %1172 = vmatprep.subr.bf16.mxu0 0
        %1173 = vmatpush1.bf16.msra.mxu0 0
        %1174 = vmatprep.subr.bf16.mxu0 0
        %1175 = vmatpush1.bf16.msra.mxu0 0
        %1176 = vmatprep.subr.bf16.mxu0 0
        %1177 = vmatpush1.bf16.msra.mxu0 0
        %1178 = vmatprep.subr.bf16.mxu0 0
        %1179 = vmatpush1.bf16.msra.mxu0 0
        %1180 = vmatprep.subr.bf16.mxu0 0
        %1181 = vmatpush1.bf16.msra.mxu0 0
        %1182 = vmatprep.subr.bf16.mxu0 0
        %1183 = vmatpush1.bf16.msra.mxu0 0
        %1184 = vmatprep.subr.bf16.mxu0 0
        %1185 = vmatpush1.bf16.msra.mxu0 0
        %1186 = vmatprep.subr.bf16.mxu0 0
        %1187 = vmatpush1.bf16.msra.mxu0 0
        %1188 = vmatprep.mubr.bf16.mxu0 0
        %1189 = vmatmul.mubr.bf16.gmra.mrb[0].mxu0 %v1109
        %v1190 = vpop.f32.mrb[0].mxu0
        %v1191 = vadd.f32 %v1087, %v1190
        %v1192 = vpop.f32.mrb[0].mxu0
        %v1193 = vpop.f32.mrb[0].mxu0
        %v1194 = vadd.f32 %v1087, %v1193
        %v1195 = vpop.f32.mrb[0].mxu0
        %1196 = vmatprep.mubr.bf16.mxu0 0
        %1197 = vmatmul.mubr.bf16.gmra.mrb[0].mxu0 %v1112
        %v1198 = vpop.f32.mrb[0].mxu0
        %v1199 = vadd.f32 %v1087, %v1198
        %v1200 = vpop.f32.mrb[0].mxu0
        %v1201 = vpop.f32.mrb[0].mxu0
        %v1202 = vadd.f32 %v1087, %v1201
        %v1203 = vpop.f32.mrb[0].mxu0
        %1204 = vmatprep.mubr.bf16.mxu0 0
        %1205 = vmatmul.mubr.bf16.gmra.mrb[0].mxu0 %v1115
        %v1206 = vpop.f32.mrb[0].mxu0
        %v1207 = vadd.f32 %v1087, %v1206
        %v1208 = vpop.f32.mrb[0].mxu0
        %v1209 = vpop.f32.mrb[0].mxu0
        %v1210 = vadd.f32 %v1087, %v1209
        %v1211 = vpop.f32.mrb[0].mxu0
        %1212 = vmatprep.mubr.bf16.mxu0 0
        %1213 = vmatmul.mubr.bf16.gmra.mrb[0].mxu0 %v1118
        %v1214 = vpop.f32.mrb[0].mxu0
        %v1215 = vadd.f32 %v1087, %v1214
        %v1216 = vpop.f32.mrb[0].mxu0
        %v1217 = vpop.f32.mrb[0].mxu0
        %v1218 = vadd.f32 %v1087, %v1217
        %v1219 = vpop.f32.mrb[0].mxu0
        %1220 = vmatprep.mubr.bf16.mxu0 0
        %1221 = vmatmul.mubr.bf16.gmra.mrb[0].mxu0 %v1121
        %v1222 = vpop.f32.mrb[0].mxu0
        %v1223 = vadd.f32 %v1087, %v1222
        %v1224 = vpop.f32.mrb[0].mxu0
        %v1225 = vpop.f32.mrb[0].mxu0
        %v1226 = vadd.f32 %v1087, %v1225
        %v1227 = vpop.f32.mrb[0].mxu0
        %1228 = vmatprep.mubr.bf16.mxu0 0
        %1229 = vmatmul.mubr.bf16.gmra.mrb[0].mxu0 %v1124
        %v1230 = vpop.f32.mrb[0].mxu0
        %v1231 = vadd.f32 %v1087, %v1230
        %v1232 = vpop.f32.mrb[0].mxu0
        %v1233 = vpop.f32.mrb[0].mxu0
        %v1234 = vadd.f32 %v1087, %v1233
        %v1235 = vpop.f32.mrb[0].mxu0
        %1236 = vmatprep.mubr.bf16.mxu0 0
        %1237 = vmatmul.mubr.bf16.gmra.mrb[0].mxu0 %v1127
        %v1238 = vpop.f32.mrb[0].mxu0
        %v1239 = vadd.f32 %v1087, %v1238
        %v1240 = vpop.f32.mrb[0].mxu0
        %v1241 = vpop.f32.mrb[0].mxu0
        %v1242 = vadd.f32 %v1087, %v1241
        %v1243 = vpop.f32.mrb[0].mxu0
        %1244 = vmatprep.mubr.bf16.mxu0 0
        %1245 = vmatmul.mubr.bf16.gmra.mrb[0].mxu0 %v1130
        %v1246 = vpop.f32.mrb[0].mxu0
        %v1247 = vadd.f32 %v1087, %v1246
        %v1248 = vpop.f32.mrb[0].mxu0
        %v1249 = vpop.f32.mrb[0].mxu0
        %v1250 = vadd.f32 %v1087, %v1249
        %v1251 = vpop.f32.mrb[0].mxu0
        %1252 = vmatprep.mubr.bf16.mxu0 0
        %1253 = vmatmul.mubr.bf16.gmra.mrb[0].mxu0 %v1133
        %v1254 = vpop.f32.mrb[0].mxu0
        %v1255 = vadd.f32 %v1087, %v1254
        %v1256 = vpop.f32.mrb[0].mxu0
        %v1257 = vpop.f32.mrb[0].mxu0
        %v1258 = vadd.f32 %v1087, %v1257
        %v1259 = vpop.f32.mrb[0].mxu0
        %1260 = vmatprep.mubr.bf16.mxu0 0
        %1261 = vmatmul.mubr.bf16.gmra.mrb[0].mxu0 %v1136
        %v1262 = vpop.f32.mrb[0].mxu0
        %v1263 = vadd.f32 %v1087, %v1262
        %v1264 = vpop.f32.mrb[0].mxu0
        %v1265 = vpop.f32.mrb[0].mxu0
        %v1266 = vadd.f32 %v1087, %v1265
        %v1267 = vpop.f32.mrb[0].mxu0
        %1268 = vmatprep.mubr.bf16.mxu0 0
        %1269 = vmatmul.mubr.bf16.gmra.mrb[0].mxu0 %v1139
        %v1270 = vpop.f32.mrb[0].mxu0
        %v1271 = vadd.f32 %v1087, %v1270
        %v1272 = vpop.f32.mrb[0].mxu0
        %v1273 = vpop.f32.mrb[0].mxu0
        %v1274 = vadd.f32 %v1087, %v1273
        %v1275 = vpop.f32.mrb[0].mxu0
        %1276 = vmatprep.mubr.bf16.mxu0 0
        %1277 = vmatmul.mubr.bf16.gmra.mrb[0].mxu0 %v1142
        %v1278 = vpop.f32.mrb[0].mxu0
        %v1279 = vadd.f32 %v1087, %v1278
        %v1280 = vpop.f32.mrb[0].mxu0
        %v1281 = vpop.f32.mrb[0].mxu0
        %v1282 = vadd.f32 %v1087, %v1281
        %v1283 = vpop.f32.mrb[0].mxu0
        %1284 = vmatprep.mubr.bf16.mxu0 0
        %1285 = vmatmul.mubr.bf16.gmra.mrb[0].mxu0 %v1145
        %v1286 = vpop.f32.mrb[0].mxu0
        %v1287 = vadd.f32 %v1087, %v1286
        %v1288 = vpop.f32.mrb[0].mxu0
        %v1289 = vpop.f32.mrb[0].mxu0
        %v1290 = vadd.f32 %v1087, %v1289
        %v1291 = vpop.f32.mrb[0].mxu0
        %1292 = vmatprep.mubr.bf16.mxu0 0
        %1293 = vmatmul.mubr.bf16.gmra.mrb[0].mxu0 %v1148
        %v1294 = vpop.f32.mrb[0].mxu0
        %v1295 = vadd.f32 %v1087, %v1294
        %v1296 = vpop.f32.mrb[0].mxu0
        %v1297 = vpop.f32.mrb[0].mxu0
        %v1298 = vadd.f32 %v1087, %v1297
        %v1299 = vpop.f32.mrb[0].mxu0
        %1300 = vmatprep.mubr.bf16.mxu0 0
        %1301 = vmatmul.mubr.bf16.gmra.mrb[0].mxu0 %v1151
        %v1302 = vpop.f32.mrb[0].mxu0
        %v1303 = vadd.f32 %v1087, %v1302
        %v1304 = vpop.f32.mrb[0].mxu0
        %v1305 = vpop.f32.mrb[0].mxu0
        %v1306 = vadd.f32 %v1087, %v1305
        %v1307 = vpop.f32.mrb[0].mxu0
        %1308 = vmatprep.mubr.bf16.mxu0 0
        %1309 = vmatmul.mubr.bf16.gmra.mrb[0].mxu0 %v1154
        %v1310 = vpop.f32.mrb[0].mxu0
        %v1311 = vadd.f32 %v1087, %v1310
        %v1312 = vpop.f32.mrb[0].mxu0
        %v1313 = vpop.f32.mrb[0].mxu0
        %v1314 = vadd.f32 %v1087, %v1313
        %v1315 = vpop.f32.mrb[0].mxu0
        %1316 = vdwg.mxu0
        %v1317 = vmax.f32 %v1191, 0.0
        %v1318 = vmax.f32 %v1194, 0.0
        %v1319 = vmax.f32 %v1199, 0.0
        %v1320 = vmax.f32 %v1202, 0.0
        %v1321 = vmax.f32 %v1207, 0.0
        %v1322 = vmax.f32 %v1210, 0.0
        %v1323 = vmax.f32 %v1215, 0.0
        %v1324 = vmax.f32 %v1218, 0.0
        %v1325 = vmax.f32 %v1223, 0.0
        %v1326 = vmax.f32 %v1226, 0.0
        %v1327 = vmax.f32 %v1231, 0.0
        %v1328 = vmax.f32 %v1234, 0.0
        %v1329 = vmax.f32 %v1239, 0.0
        %v1330 = vmax.f32 %v1242, 0.0
        %v1331 = vmax.f32 %v1247, 0.0
        %v1332 = vmax.f32 %v1250, 0.0
        %v1333 = vmax.f32 %v1255, 0.0
        %v1334 = vmax.f32 %v1258, 0.0
        %v1335 = vmax.f32 %v1263, 0.0
        %v1336 = vmax.f32 %v1266, 0.0
        %v1337 = vmax.f32 %v1271, 0.0
        %v1338 = vmax.f32 %v1274, 0.0
        %v1339 = vmax.f32 %v1279, 0.0
        %v1340 = vmax.f32 %v1282, 0.0
        %v1341 = vmax.f32 %v1287, 0.0
        %v1342 = vmax.f32 %v1290, 0.0
        %v1343 = vmax.f32 %v1295, 0.0
        %v1344 = vmax.f32 %v1298, 0.0
        %v1345 = vmax.f32 %v1303, 0.0
        %v1346 = vmax.f32 %v1306, 0.0
        %v1347 = vmax.f32 %v1311, 0.0
        %v1348 = vmax.f32 %v1314, 0.0
        %v1349 = vadd.f32 %v1317, %v1318
        %v1350 = vadd.f32 %v1349, %v1319
        %v1351 = vadd.f32 %v1350, %v1320
        %v1352 = vadd.f32 %v1351, %v1321
        %v1353 = vadd.f32 %v1352, %v1322
        %v1354 = vadd.f32 %v1353, %v1323
        %v1355 = vadd.f32 %v1354, %v1324
        %v1356 = vadd.f32 %v1355, %v1325
        %v1357 = vadd.f32 %v1356, %v1326
        %v1358 = vadd.f32 %v1357, %v1327
        %v1359 = vadd.f32 %v1358, %v1328
        %v1360 = vadd.f32 %v1359, %v1329
        %v1361 = vadd.f32 %v1360, %v1330
        %v1362 = vadd.f32 %v1361, %v1331
        %v1363 = vadd.f32 %v1362, %v1332
        %v1364 = vrot.slane %v1363, 4
        %v1365 = vadd.f32 %v1363, %v1364
        %v1366 = vrot.slane %v1365, 2
        %v1367 = vadd.f32 %v1365, %v1366
        %v1368 = vrot.slane %v1367, 1
        %v1369 = vadd.f32 %v1367, %v1368
        %v1370 = vadd.f32 %v1333, %v1334
        %v1371 = vadd.f32 %v1370, %v1335
        %v1372 = vadd.f32 %v1371, %v1336
        %v1373 = vadd.f32 %v1372, %v1337
        %v1374 = vadd.f32 %v1373, %v1338
        %v1375 = vadd.f32 %v1374, %v1339
        %v1376 = vadd.f32 %v1375, %v1340
        %v1377 = vadd.f32 %v1376, %v1341
        %v1378 = vadd.f32 %v1377, %v1342
        %v1379 = vadd.f32 %v1378, %v1343
        %v1380 = vadd.f32 %v1379, %v1344
        %v1381 = vadd.f32 %v1380, %v1345
        %v1382 = vadd.f32 %v1381, %v1346
        %v1383 = vadd.f32 %v1382, %v1347
        %v1384 = vadd.f32 %v1383, %v1348
        %v1385 = vrot.slane %v1384, 4
        %v1386 = vadd.f32 %v1384, %v1385
        %v1387 = vrot.slane %v1386, 2
        %v1388 = vadd.f32 %v1386, %v1387
        %v1389 = vrot.slane %v1388, 1
        %v1390 = vadd.f32 %v1388, %v1389
        %v1391 = vld [vmem:[#allocation2] sm:$0x3]
        %vm1392 = vcmask 1040384
        %v1393 = vsel %vm1392, %v1369, %v1390
        %v1394 = vadd.f32 %v1391, %v1393
        %1395 = vst [vmem:[#allocation2] sm:$0x3] %v1394
        %p1396 = scmp.eq.s32.totalorder %s32, 1
        // Predicated region
        $region98: #{siamese_feature_network.1} parent=88 // pred_check
          %p1397 = pneg %p1396
        $region99: #{siamese_feature_network.1} parent=88 // pred_check_branch
          %1399 = sbr.rel (%p1397) target = $region101
        $region100: #{siamese_feature_network.1} parent=88 // pred_region
          %v1400 = vld [vmem:[#allocation2] sm:$0x1]
          %v1401 = vmul.f32 %v1400, 0.00390625
          %v1402 = vld [vmem:[#allocation2 + $0x1] sm:$0x1]
          %v1403 = vmul.f32 %v1402, 0.00390625
          %v1404 = vld [vmem:[%s3] sm:$0xff]
          %v1405 = vld [vmem:[%s3 + $0x8] sm:$0xff]
          %v1406 = vld [vmem:[%s3 + $0x10] sm:$0xff]
          %v1407 = vld [vmem:[%s3 + $0x18] sm:$0xff]
          %v1408 = vld [vmem:[%s3 + $0x20] sm:$0xff]
          %v1409 = vld [vmem:[%s3 + $0x28] sm:$0xff]
          %v1410 = vld [vmem:[%s3 + $0x30] sm:$0xff]
          %v1411 = vld [vmem:[%s3 + $0x38] sm:$0xff]
          %v1412 = vld [vmem:[%s3 + $0x40] sm:$0xff]
          %v1413 = vld [vmem:[%s3 + $0x48] sm:$0xff]
          %v1414 = vld [vmem:[%s3 + $0x50] sm:$0xff]
          %v1415 = vld [vmem:[%s3 + $0x58] sm:$0xff]
          %v1416 = vld [vmem:[%s3 + $0x60] sm:$0xff]
          %v1417 = vld [vmem:[%s3 + $0x68] sm:$0xff]
          %v1418 = vld [vmem:[%s3 + $0x70] sm:$0xff]
          %v1419 = vld [vmem:[%s3 + $0x78] sm:$0xff]
          %v1420 = vld [vmem:[%s4] sm:$0xff]
          %v1421 = vld [vmem:[%s4 + $0x8] sm:$0xff]
          %v1422 = vld [vmem:[%s4 + $0x10] sm:$0xff]
          %v1423 = vld [vmem:[%s4 + $0x18] sm:$0xff]
          %v1424 = vld [vmem:[%s4 + $0x20] sm:$0xff]
          %v1425 = vld [vmem:[%s4 + $0x28] sm:$0xff]
          %v1426 = vld [vmem:[%s4 + $0x30] sm:$0xff]
          %v1427 = vld [vmem:[%s4 + $0x38] sm:$0xff]
          %v1428 = vld [vmem:[%s4 + $0x40] sm:$0xff]
          %v1429 = vld [vmem:[%s4 + $0x48] sm:$0xff]
          %v1430 = vld [vmem:[%s4 + $0x50] sm:$0xff]
          %v1431 = vld [vmem:[%s4 + $0x58] sm:$0xff]
          %v1432 = vld [vmem:[%s4 + $0x60] sm:$0xff]
          %v1433 = vld [vmem:[%s4 + $0x68] sm:$0xff]
          %v1434 = vld [vmem:[%s4 + $0x70] sm:$0xff]
          %v1435 = vld [vmem:[%s4 + $0x78] sm:$0xff]
          %1436 = vmatprep.subr.mxu0 0.0
          %1437 = vmatpush1.msra.mxu0 %v1420
          %1438 = vmatprep.subr.mxu0 0.0
          %1439 = vmatpush1.msra.mxu0 %v1421
          %1440 = vmatprep.subr.mxu0 0.0
          %1441 = vmatpush1.msra.mxu0 %v1422
          %1442 = vmatprep.subr.mxu0 0.0
          %1443 = vmatpush1.msra.mxu0 %v1423
          %1444 = vmatprep.subr.mxu0 0.0
          %1445 = vmatpush1.msra.mxu0 %v1424
          %1446 = vmatprep.subr.mxu0 0.0
          %1447 = vmatpush1.msra.mxu0 %v1425
          %1448 = vmatprep.subr.mxu0 0.0
          %1449 = vmatpush1.msra.mxu0 %v1426
          %1450 = vmatprep.subr.mxu0 0.0
          %1451 = vmatpush1.msra.mxu0 %v1427
          %1452 = vmatprep.subr.mxu0 0.0
          %1453 = vmatpush1.msra.mxu0 %v1428
          %1454 = vmatprep.subr.mxu0 0.0
          %1455 = vmatpush1.msra.mxu0 %v1429
          %1456 = vmatprep.subr.mxu0 0.0
          %1457 = vmatpush1.msra.mxu0 %v1430
          %1458 = vmatprep.subr.mxu0 0.0
          %1459 = vmatpush1.msra.mxu0 %v1431
          %1460 = vmatprep.subr.mxu0 0.0
          %1461 = vmatpush1.msra.mxu0 %v1432
          %1462 = vmatprep.subr.mxu0 0.0
          %1463 = vmatpush1.msra.mxu0 %v1433
          %1464 = vmatprep.subr.mxu0 0.0
          %1465 = vmatpush1.msra.mxu0 %v1434
          %1466 = vmatprep.subr.mxu0 0.0
          %1467 = vmatpush1.msra.mxu0 %v1435
          %1468 = vmatprep.subr.mxu0 0.0
          %1469 = vmatpush1.msra.mxu0 0.0
          %1470 = vmatprep.subr.mxu0 0.0
          %1471 = vmatpush1.msra.mxu0 0.0
          %1472 = vmatprep.subr.mxu0 0.0
          %1473 = vmatpush1.msra.mxu0 0.0
          %1474 = vmatprep.subr.mxu0 0.0
          %1475 = vmatpush1.msra.mxu0 0.0
          %1476 = vmatprep.subr.mxu0 0.0
          %1477 = vmatpush1.msra.mxu0 0.0
          %1478 = vmatprep.subr.mxu0 0.0
          %1479 = vmatpush1.msra.mxu0 0.0
          %1480 = vmatprep.subr.mxu0 0.0
          %1481 = vmatpush1.msra.mxu0 0.0
          %1482 = vmatprep.subr.mxu0 0.0
          %1483 = vmatpush1.msra.mxu0 0.0
          %1484 = vmatprep.subr.mxu0 0.0
          %1485 = vmatpush1.msra.mxu0 0.0
          %1486 = vmatprep.subr.mxu0 0.0
          %1487 = vmatpush1.msra.mxu0 0.0
          %1488 = vmatprep.subr.mxu0 0.0
          %1489 = vmatpush1.msra.mxu0 0.0
          %1490 = vmatprep.subr.mxu0 0.0
          %1491 = vmatpush1.msra.mxu0 0.0
          %1492 = vmatprep.subr.mxu0 0.0
          %1493 = vmatpush1.msra.mxu0 0.0
          %1494 = vmatprep.subr.mxu0 0.0
          %1495 = vmatpush1.msra.mxu0 0.0
          %1496 = vmatprep.subr.mxu0 0.0
          %1497 = vmatpush1.msra.mxu0 0.0
          %1498 = vmatprep.subr.mxu0 0.0
          %1499 = vmatpush1.msra.mxu0 0.0
          %1500 = vmatprep.mubr.f32.mxu0 0.0
          %1501 = vmatmul.mubr.f32.gmra.mrb[0].mxu0 %v1403
          %v1502 = vpop.f32.mrb[0].mxu0
          %v1503 = vadd.f32 0.0, %v1502
          %v1504 = vpop.f32.mrb[0].mxu0
          %1505 = vdwg.mxu0
          %1506 = vmatprep.subr.mxu0 0.0
          %1507 = vmatpush1.msra.mxu0 %v1404
          %1508 = vmatprep.subr.mxu0 0.0
          %1509 = vmatpush1.msra.mxu0 %v1405
          %1510 = vmatprep.subr.mxu0 0.0
          %1511 = vmatpush1.msra.mxu0 %v1406
          %1512 = vmatprep.subr.mxu0 0.0
          %1513 = vmatpush1.msra.mxu0 %v1407
          %1514 = vmatprep.subr.mxu0 0.0
          %1515 = vmatpush1.msra.mxu0 %v1408
          %1516 = vmatprep.subr.mxu0 0.0
          %1517 = vmatpush1.msra.mxu0 %v1409
          %1518 = vmatprep.subr.mxu0 0.0
          %1519 = vmatpush1.msra.mxu0 %v1410
          %1520 = vmatprep.subr.mxu0 0.0
          %1521 = vmatpush1.msra.mxu0 %v1411
          %1522 = vmatprep.subr.mxu0 0.0
          %1523 = vmatpush1.msra.mxu0 %v1412
          %1524 = vmatprep.subr.mxu0 0.0
          %1525 = vmatpush1.msra.mxu0 %v1413
          %1526 = vmatprep.subr.mxu0 0.0
          %1527 = vmatpush1.msra.mxu0 %v1414
          %1528 = vmatprep.subr.mxu0 0.0
          %1529 = vmatpush1.msra.mxu0 %v1415
          %1530 = vmatprep.subr.mxu0 0.0
          %1531 = vmatpush1.msra.mxu0 %v1416
          %1532 = vmatprep.subr.mxu0 0.0
          %1533 = vmatpush1.msra.mxu0 %v1417
          %1534 = vmatprep.subr.mxu0 0.0
          %1535 = vmatpush1.msra.mxu0 %v1418
          %1536 = vmatprep.subr.mxu0 0.0
          %1537 = vmatpush1.msra.mxu0 %v1419
          %1538 = vmatprep.subr.mxu0 0.0
          %1539 = vmatpush1.msra.mxu0 0.0
          %1540 = vmatprep.subr.mxu0 0.0
          %1541 = vmatpush1.msra.mxu0 0.0
          %1542 = vmatprep.subr.mxu0 0.0
          %1543 = vmatpush1.msra.mxu0 0.0
          %1544 = vmatprep.subr.mxu0 0.0
          %1545 = vmatpush1.msra.mxu0 0.0
          %1546 = vmatprep.subr.mxu0 0.0
          %1547 = vmatpush1.msra.mxu0 0.0
          %1548 = vmatprep.subr.mxu0 0.0
          %1549 = vmatpush1.msra.mxu0 0.0
          %1550 = vmatprep.subr.mxu0 0.0
          %1551 = vmatpush1.msra.mxu0 0.0
          %1552 = vmatprep.subr.mxu0 0.0
          %1553 = vmatpush1.msra.mxu0 0.0
          %1554 = vmatprep.subr.mxu0 0.0
          %1555 = vmatpush1.msra.mxu0 0.0
          %1556 = vmatprep.subr.mxu0 0.0
          %1557 = vmatpush1.msra.mxu0 0.0
          %1558 = vmatprep.subr.mxu0 0.0
          %1559 = vmatpush1.msra.mxu0 0.0
          %1560 = vmatprep.subr.mxu0 0.0
          %1561 = vmatpush1.msra.mxu0 0.0
          %1562 = vmatprep.subr.mxu0 0.0
          %1563 = vmatpush1.msra.mxu0 0.0
          %1564 = vmatprep.subr.mxu0 0.0
          %1565 = vmatpush1.msra.mxu0 0.0
          %1566 = vmatprep.subr.mxu0 0.0
          %1567 = vmatpush1.msra.mxu0 0.0
          %1568 = vmatprep.subr.mxu0 0.0
          %1569 = vmatpush1.msra.mxu0 0.0
          %1570 = vmatprep.mubr.f32.mxu0 0.0
          %1571 = vmatmul.mubr.f32.gmra.mrb[0].mxu0 %v1401
          %v1572 = vpop.f32.mrb[0].mxu0
          %v1573 = vadd.f32 %v1503, %v1572
          %v1574 = vpop.f32.mrb[0].mxu0
          %1575 = vdwg.mxu0
          %v1576 = vld [vmem:[%s5] sm:$0x1]
          %v1577 = vadd.f32 %v1573, %v1576
          %v1578 = vmax.f32 %v1577, 0.0
          %v1579 = vld [vmem:[%s6] sm:$0xff]
          %v1580 = vld [vmem:[%s6 + $0x8] sm:$0xff]
          %v1581 = vld [vmem:[%s6 + $0x10] sm:$0xff]
          %v1582 = vld [vmem:[%s6 + $0x18] sm:$0xff]
          %v1583 = vld [vmem:[%s6 + $0x20] sm:$0xff]
          %v1584 = vld [vmem:[%s6 + $0x28] sm:$0xff]
          %v1585 = vld [vmem:[%s6 + $0x30] sm:$0xff]
          %v1586 = vld [vmem:[%s6 + $0x38] sm:$0xff]
          %v1587 = vld [vmem:[%s6 + $0x40] sm:$0xff]
          %v1588 = vld [vmem:[%s6 + $0x48] sm:$0xff]
          %v1589 = vld [vmem:[%s6 + $0x50] sm:$0xff]
          %v1590 = vld [vmem:[%s6 + $0x58] sm:$0xff]
          %v1591 = vld [vmem:[%s6 + $0x60] sm:$0xff]
          %v1592 = vld [vmem:[%s6 + $0x68] sm:$0xff]
          %v1593 = vld [vmem:[%s6 + $0x70] sm:$0xff]
          %v1594 = vld [vmem:[%s6 + $0x78] sm:$0xff]
          %v1595 = vld [vmem:[%s7] sm:$0x1]
          %1596 = vmatprep.subr.mxu0 0.0
          %1597 = vmatpush1.msra.mxu0 %v1579
          %1598 = vmatprep.subr.mxu0 0.0
          %1599 = vmatpush1.msra.mxu0 %v1580
          %1600 = vmatprep.subr.mxu0 0.0
          %1601 = vmatpush1.msra.mxu0 %v1581
          %1602 = vmatprep.subr.mxu0 0.0
          %1603 = vmatpush1.msra.mxu0 %v1582
          %1604 = vmatprep.subr.mxu0 0.0
          %1605 = vmatpush1.msra.mxu0 %v1583
          %1606 = vmatprep.subr.mxu0 0.0
          %1607 = vmatpush1.msra.mxu0 %v1584
          %1608 = vmatprep.subr.mxu0 0.0
          %1609 = vmatpush1.msra.mxu0 %v1585
          %1610 = vmatprep.subr.mxu0 0.0
          %1611 = vmatpush1.msra.mxu0 %v1586
          %1612 = vmatprep.subr.mxu0 0.0
          %1613 = vmatpush1.msra.mxu0 %v1587
          %1614 = vmatprep.subr.mxu0 0.0
          %1615 = vmatpush1.msra.mxu0 %v1588
          %1616 = vmatprep.subr.mxu0 0.0
          %1617 = vmatpush1.msra.mxu0 %v1589
          %1618 = vmatprep.subr.mxu0 0.0
          %1619 = vmatpush1.msra.mxu0 %v1590
          %1620 = vmatprep.subr.mxu0 0.0
          %1621 = vmatpush1.msra.mxu0 %v1591
          %1622 = vmatprep.subr.mxu0 0.0
          %1623 = vmatpush1.msra.mxu0 %v1592
          %1624 = vmatprep.subr.mxu0 0.0
          %1625 = vmatpush1.msra.mxu0 %v1593
          %1626 = vmatprep.subr.mxu0 0.0
          %1627 = vmatpush1.msra.mxu0 %v1594
          %1628 = vmatprep.subr.mxu0 0.0
          %1629 = vmatpush1.msra.mxu0 0.0
          %1630 = vmatprep.subr.mxu0 0.0
          %1631 = vmatpush1.msra.mxu0 0.0
          %1632 = vmatprep.subr.mxu0 0.0
          %1633 = vmatpush1.msra.mxu0 0.0
          %1634 = vmatprep.subr.mxu0 0.0
          %1635 = vmatpush1.msra.mxu0 0.0
          %1636 = vmatprep.subr.mxu0 0.0
          %1637 = vmatpush1.msra.mxu0 0.0
          %1638 = vmatprep.subr.mxu0 0.0
          %1639 = vmatpush1.msra.mxu0 0.0
          %1640 = vmatprep.subr.mxu0 0.0
          %1641 = vmatpush1.msra.mxu0 0.0
          %1642 = vmatprep.subr.mxu0 0.0
          %1643 = vmatpush1.msra.mxu0 0.0
          %1644 = vmatprep.subr.mxu0 0.0
          %1645 = vmatpush1.msra.mxu0 0.0
          %1646 = vmatprep.subr.mxu0 0.0
          %1647 = vmatpush1.msra.mxu0 0.0
          %1648 = vmatprep.subr.mxu0 0.0
          %1649 = vmatpush1.msra.mxu0 0.0
          %1650 = vmatprep.subr.mxu0 0.0
          %1651 = vmatpush1.msra.mxu0 0.0
          %1652 = vmatprep.subr.mxu0 0.0
          %1653 = vmatpush1.msra.mxu0 0.0
          %1654 = vmatprep.subr.mxu0 0.0
          %1655 = vmatpush1.msra.mxu0 0.0
          %1656 = vmatprep.subr.mxu0 0.0
          %1657 = vmatpush1.msra.mxu0 0.0
          %1658 = vmatprep.subr.mxu0 0.0
          %1659 = vmatpush1.msra.mxu0 0.0
          %1660 = vmatprep.mubr.f32.mxu0 0.0
          %1661 = vmatmul.mubr.f32.gmra.mrb[0].mxu0 %v1578
          %v1662 = vpop.f32.mrb[0].mxu0
          %v1663 = vadd.f32 %v1595, %v1662
          %v1664 = vpop.f32.mrb[0].mxu0
          %1665 = vdwg.mxu0
          %1666 = vst [vmem:[%s553] sm:$0x1] %v1578
          %1667 = vst [vmem:[%s547] sm:$0x1] %v1663
        $region101: #{siamese_feature_network.1} parent=88 // pred_fallthru
          _
        %s1668 = sand.u32 %s222, 1
        %s1669 = scalar_lea.sflag [#allocation6], %s1668
        %s1670 = sand.u32 %s222, 1
        %s1671 = scalar_lea.vmem [#allocation5], %s1670
        %s1672 = sand.u32 %s248, 1
        %s1673 = scalar_lea.sflag [#allocation8], %s1672
        %s1674 = sand.u32 %s248, 1
        %s1675 = scalar_lea.vmem [#allocation7], %s1674
        // Predicated region
        $region102: #{siamese_feature_network.1} parent=88 // pred_check
          %p1676 = pneg %p232
        $region103: #{siamese_feature_network.1} parent=88 // pred_check_branch
          %1678 = sbr.rel (%p1676) target = $region105
        $region104: #{siamese_feature_network.1} parent=88 // pred_region
          %s1680 = ssub.s32 16, 16
          %1681 = vsyncadd %s1669, %s1680
          %s1682 = smul.addr %s31, 16
          %s1683 = scalar_lea.hbm %s8, %s1682
          %s1685 = sshll.u32 %s1671, 4
          %s1686 = int_to_ptr.vmem [resolvable:$true] %s1685
          %1688 = dma.vmem_to_hbm [thread:$0]  %s1686, 16, %s1683, %s1669
        $region105: #{siamese_feature_network.1} parent=88 // pred_fallthru
          _
        // Predicated region
        $region106: #{siamese_feature_network.1} parent=88 // pred_check
          %p1689 = pneg %p258
        $region107: #{siamese_feature_network.1} parent=88 // pred_check_branch
          %1691 = sbr.rel (%p1689) target = $region109
        $region108: #{siamese_feature_network.1} parent=88 // pred_region
          %s1693 = ssub.s32 16, 16
          %1694 = vsyncadd %s1673, %s1693
          %s1695 = smul.addr %s31, 16
          %s1696 = scalar_lea.hbm %s9, %s1695
          %s1698 = sshll.u32 %s1675, 4
          %s1699 = int_to_ptr.vmem [resolvable:$true] %s1698
          %1701 = dma.vmem_to_hbm [thread:$0]  %s1699, 16, %s1696, %s1673
        $region109: #{siamese_feature_network.1} parent=88 // pred_fallthru
          _
      $region89: #{siamese_feature_network.1} parent=5 // pred_fallthru
        _
      %p1702 = scmp.le.s32.totalorder 2, %s22
      // Predicated region
      $region110: #{siamese_feature_network.1} parent=5 // pred_check
        %p1703 = pneg %p1702
      $region111: #{siamese_feature_network.1} parent=5 // pred_check_branch
        %1705 = sbr.rel (%p1703) target = $region113
      $region112: #{siamese_feature_network.1} parent=5 // pred_region
        %s1706 = ssub.s32 %s22, 2
        // Predicated region
        $region114: #{siamese_feature_network.1} parent=112 // pred_check
          %p1707 = pneg %p238
        $region115: #{siamese_feature_network.1} parent=112 // pred_check_branch
          %1709 = sbr.rel (%p1707) target = $region117
        $region116: #{siamese_feature_network.1} parent=112 // pred_region
          %s1710 = sand.u32 %s223, 1
          %s1711 = scalar_lea.sflag [#allocation6], %s1710
          %s1712 = sand.u32 %s223, 1
          %s1713 = scalar_lea.vmem [#allocation5], %s1712
          %1714 = dma.done %s1711, 16
        $region117: #{siamese_feature_network.1} parent=112 // pred_fallthru
          _
        // Predicated region
        $region118: #{siamese_feature_network.1} parent=112 // pred_check
          %p1715 = pneg %p264
        $region119: #{siamese_feature_network.1} parent=112 // pred_check_branch
          %1717 = sbr.rel (%p1715) target = $region121
        $region120: #{siamese_feature_network.1} parent=112 // pred_region
          %s1718 = sand.u32 %s249, 1
          %s1719 = scalar_lea.sflag [#allocation8], %s1718
          %s1720 = sand.u32 %s249, 1
          %s1721 = scalar_lea.vmem [#allocation7], %s1720
          %1722 = dma.done %s1719, 16
        $region121: #{siamese_feature_network.1} parent=112 // pred_fallthru
          _
      $region113: #{siamese_feature_network.1} parent=5 // pred_fallthru
        _
    $region6: #{siamese_feature_network.1} parent=1 // loop_footer
      %s26 = sadd.s32 1, %s22
    $region7: #{siamese_feature_network.1} parent=1 // loop_footer_branch
      %21 = sbr.rel target = $region3
    $region8: #{siamese_feature_network.1} parent=1 // loop_exit
      _
    %1723 = vsyncpa [#allocation6], 1
    %s1724 = scalar_lea.sflag [#allocation6], 1
    %1725 = vsyncpa %s1724, 1
    %1726 = vsyncpa [#allocation8], 1
    %s1727 = scalar_lea.sflag [#allocation8], 1
    %1728 = vsyncpa %s1727, 1

</llo_original>
